<compile_context>
chip_gen: v7x
topology: tpu7x:2x2x1
jax: 0.10.0
libtpu: 0.0.40
codegen_flags: <defaults>
</compile_context>

<pallas_src>
import functools

import jax
import jax.numpy as jnp
from jax import lax
from jax.experimental import pallas as pl
from jax.experimental.pallas import tpu as pltpu


def _round_up(x, m):
    return (x + m - 1) // m * m


# --------------------------------------------------------------------------- kernel

def _conv_gn_relu_kernel(x_ref, w_ref, b_ref, gamma_ref, beta_ref, a_ref, at_ref,
                         o_ref, *, Ho, Wo, K, Cin, eps, inv_count):
    """Fused Conv2d(KxK) + GroupNorm + ReLU for one sample.

    x_ref:     (1, Hp, Wp, Cin)  spatially padded input, compute dtype (bf16)
    w_ref:     (K*K*Cin, Cp)     weights, row j = (kh*K + kw)*Cin + c (Cout zero-padded)
    b_ref:     (1, Cp) f32       conv bias  (0 on padded channels)
    gamma_ref: (1, Cp) f32       GN scale   (0 on padded channels)
    beta_ref:  (1, Cp) f32       GN shift   (0 on padded channels)
    a_ref:     (Cp, G) f32       one-hot channel->group (0 rows for padded channels)
    at_ref:    (G, Cp) f32       one-hot group->channel (0 cols for padded channels)
    o_ref:     (1, P, Cp)        output, P = Ho*Wo
    """
    P = Ho * Wo
    x = x_ref[0]                                       # (Hp, Wp, Cin) resident in VMEM

    # ---- in-kernel im2col: build the (P, K*K*Cin) LHS once ----------------------------
    taps = []
    for kh in range(K):
        for kw in range(K):
            taps.append(x[kh:kh + Ho, kw:kw + Wo, :].reshape(P, Cin))
    patches = jnp.concatenate(taps, axis=-1)           # (P, K*K*Cin)

    # ---- conv as ONE MXU matmul, contraction K*K*Cin, f32 accumulation ----------------
    acc = jnp.dot(patches, w_ref[...], preferred_element_type=jnp.float32)   # (P, Cp)

    # ---- GroupNorm statistics, single pass; bias folded analytically ------------------
    b = b_ref[...]
    s = jnp.sum(acc, axis=0, keepdims=True)            # (1, Cp) per-channel sum(conv)
    q = jnp.sum(acc * acc, axis=0, keepdims=True)      # (1, Cp) per-channel sum(conv^2)
    s_y = s + P * b                                    # stats of conv + bias
    q_y = q + 2.0 * b * s + P * (b * b)

    mean_g = jnp.dot(s_y, a_ref[...], preferred_element_type=jnp.float32) * inv_count
    ex2_g = jnp.dot(q_y, a_ref[...], preferred_element_type=jnp.float32) * inv_count
    var_g = ex2_g - mean_g * mean_g                    # E[y^2] - E[y]^2 (ok at test tol)
    inv_g = lax.rsqrt(var_g + eps)                     # EUP slot

    mean_c = jnp.dot(mean_g, at_ref[...], preferred_element_type=jnp.float32)   # (1, Cp)
    inv_c = jnp.dot(inv_g, at_ref[...], preferred_element_type=jnp.float32)     # (1, Cp)

    # ---- fused normalize + affine + ReLU, single pass over (P, Cp) --------------------
    scale = inv_c * gamma_ref[...]                     # 0 on padded channels
    shift = beta_ref[...] + (b - mean_c) * scale
    o_ref[0] = jnp.maximum(acc * scale + shift, 0.0).astype(o_ref.dtype)


# --------------------------------------------------------------------------- wrappers

def unet_conv_layer_nhwc(x_nhwc, w, b, gamma, beta, *, num_groups, padding,
                         eps=1e-5, compute_dtype=jnp.bfloat16, out_dtype=jnp.bfloat16):
    """Conv2d(K, padding) + GroupNorm(num_groups) + ReLU.  NHWC in -> NHWC out."""
    N, H, W, Cin = x_nhwc.shape
    Cout, Cin_w, K, K2 = w.shape
    assert Cin_w == Cin and K == K2
    # TODO(synk): num_groups == 0 (BatchNorm2d branch) not implemented.
    assert num_groups > 0 and Cout % num_groups == 0
    G = num_groups
    cg = Cout // G
    Hp, Wp = H + 2 * padding, W + 2 * padding
    Ho, Wo = Hp - K + 1, Wp - K + 1
    P = Ho * Wo
    # Lane-dense output; multiple of 256 for large Cout so v6e/v7x 256-wide MXU N is full.
    Cp = _round_up(Cout, 256 if Cout >= 256 else 128)

    # Spatial pad, cast to bf16 for the MXU (f32 accumulation in-kernel).
    xp = jnp.pad(x_nhwc, ((0, 0), (padding, padding), (padding, padding), (0, 0)))
    xp = xp.astype(compute_dtype)

    # torch (Cout, Cin, K, K) -> (K*K*Cin, Cp), contraction index j = (kh*K + kw)*Cin + c.
    w2 = jnp.transpose(w, (2, 3, 1, 0)).reshape(K * K * Cin, Cout)
    w2 = jnp.pad(w2, ((0, 0), (0, Cp - Cout))).astype(compute_dtype)
    bp = jnp.pad(b.astype(jnp.float32), (0, Cp - Cout)).reshape(1, Cp)
    gp = jnp.pad(gamma.astype(jnp.float32), (0, Cp - Cout)).reshape(1, Cp)
    tp = jnp.pad(beta.astype(jnp.float32), (0, Cp - Cout)).reshape(1, Cp)

    # One-hot channel<->group maps, padded channels excluded (hoisted out of the kernel).
    ch = jnp.arange(Cp)
    A = ((ch[:, None] // cg == jnp.arange(G)[None, :]) & (ch[:, None] < Cout)
         ).astype(jnp.float32)                         # (Cp, G)
    AT = A.T                                           # (G, Cp)

    kernel = functools.partial(_conv_gn_relu_kernel, Ho=Ho, Wo=Wo, K=K, Cin=Cin,
                               eps=eps, inv_count=1.0 / float(P * cg))

    out = pl.pallas_call(
        kernel,
        out_shape=jax.ShapeDtypeStruct((N, P, Cp), out_dtype),
        grid=(N,),
        in_specs=[
            pl.BlockSpec((1, Hp, Wp, Cin), lambda n: (n, 0, 0, 0)),   # padded sample
            pl.BlockSpec((K * K * Cin, Cp), lambda n: (0, 0)),        # weights (const)
            pl.BlockSpec((1, Cp), lambda n: (0, 0)),                  # bias
            pl.BlockSpec((1, Cp), lambda n: (0, 0)),                  # gamma
            pl.BlockSpec((1, Cp), lambda n: (0, 0)),                  # beta
            pl.BlockSpec((Cp, G), lambda n: (0, 0)),                  # channel->group
            pl.BlockSpec((G, Cp), lambda n: (0, 0)),                  # group->channel
        ],
        out_specs=pl.BlockSpec((1, P, Cp), lambda n: (n, 0, 0)),
        compiler_params=pltpu.CompilerParams(
            dimension_semantics=("parallel",),
            vmem_limit_bytes=32 * 1024 * 1024),
    )(xp, w2, bp, gp, tp, A, AT)

    if Cp != Cout:
        out = out[:, :, :Cout]
    return out.reshape(N, Ho, Wo, Cout)


def unet_conv_layer(x_nchw, w, b, gamma, beta, *, num_groups, padding,
                    eps=1e-5, compute_dtype=jnp.bfloat16, out_dtype=jnp.bfloat16):
    """PyTorch-layout adapter: NCHW in -> NCHW out (prefer the NHWC API between layers)."""
    x = jnp.transpose(x_nchw, (0, 2, 3, 1))
    y = unet_conv_layer_nhwc(x, w, b, gamma, beta, num_groups=num_groups, padding=padding,
                             eps=eps, compute_dtype=compute_dtype, out_dtype=out_dtype)
    return jnp.transpose(y, (0, 3, 1, 2))


# --------------------------------------------------------------------------- reference

def _reference(x_nchw, w, b, gamma, beta, *, num_groups, padding,
               eps=1e-5, compute_dtype=jnp.bfloat16):
    """Pure-JAX reference with the same bf16 input/weight rounding as the kernel."""
    xc = x_nchw.astype(compute_dtype).astype(jnp.float32)
    wc = w.astype(compute_dtype).astype(jnp.float32)
    y = lax.conv_general_dilated(
        xc, wc, window_strides=(1, 1),
        padding=[(padding, padding), (padding, padding)],
        dimension_numbers=("NCHW", "OIHW", "NCHW"),
        precision=lax.Precision.HIGHEST)
    y = y + b.reshape(1, -1, 1, 1)
    N, C, Ho, Wo = y.shape
    yg = y.reshape(N, num_groups, C // num_groups, Ho, Wo)
    mean = jnp.mean(yg, axis=(2, 3, 4), keepdims=True)
    var = jnp.var(yg, axis=(2, 3, 4), keepdims=True)
    yn = ((yg - mean) * lax.rsqrt(var + eps)).reshape(N, C, Ho, Wo)
    return jnp.maximum(yn * gamma.reshape(1, -1, 1, 1) + beta.reshape(1, -1, 1, 1), 0.0)


# --------------------------------------------------------------------------- main

if __name__ == "__main__":
    N = 2
    in_channels = 16
    out_channels = 32
    kernel_size = 3
    padding = 1
    num_groups = 4
    H = W = 16

    key = jax.random.PRNGKey(0)
    kx, kwk, kb, kg, kt = jax.random.split(key, 5)
    x = jax.random.normal(kx, (N, in_channels, H, W), jnp.float32)
    w = 0.1 * jax.random.normal(
        kwk, (out_channels, in_channels, kernel_size, kernel_size), jnp.float32)
    b = 0.1 * jax.random.normal(kb, (out_channels,), jnp.float32)
    gamma = 1.0 + 0.1 * jax.random.normal(kg, (out_channels,), jnp.float32)
    beta = 0.1 * jax.random.normal(kt, (out_channels,), jnp.float32)

    fwd = jax.jit(functools.partial(unet_conv_layer,
                                    num_groups=num_groups, padding=padding))
    out = fwd(x, w, b, gamma, beta)
    jax.block_until_ready(out)

    assert out.shape == (N, out_channels, H, W), out.shape
    assert bool(jnp.all(jnp.isfinite(out)))

    ref = _reference(x, w, b, gamma, beta, num_groups=num_groups, padding=padding)
    err = float(jnp.max(jnp.abs(out - ref)))
    # bf16 output rounding: half-ulp near |y| ~ 4 is ~0.016, so compare at 3e-2.
    assert err < 3e-2, f"max |err| = {err}"
    print("KERNEL_OK")
</pallas_src>

<mosaic_0001>
module attributes {stable_mosaic.version = 11 : i64} {
  func.func @_conv_gn_relu_kernel(%arg0: i32, %arg1: memref<1x18x18x16xbf16, #tpu.memory_space<vmem>>, %arg2: memref<144x128xbf16, #tpu.memory_space<vmem>>, %arg3: memref<1x128xf32, #tpu.memory_space<vmem>>, %arg4: memref<1x128xf32, #tpu.memory_space<vmem>>, %arg5: memref<1x128xf32, #tpu.memory_space<vmem>>, %arg6: memref<128x4xf32, #tpu.memory_space<vmem>>, %arg7: memref<4x128xf32, #tpu.memory_space<vmem>>, %arg8: memref<1x256x128xbf16, #tpu.memory_space<vmem>>) attributes {dimension_semantics = [#tpu.dimension_semantics<parallel>], iteration_bounds = array<i64: 2>, scalar_prefetch = 0 : i64, scratch_operands = 0 : i64, tpu.core_type = #tpu.core_type<tc>, window_params = [{transform_indices = @transform_0, window_bounds = array<i64: 1, 18, 18, 16>}, {pipeline_mode = #tpu.pipeline_mode<synchronous>, transform_indices = @transform_1, window_bounds = array<i64: 144, 128>}, {pipeline_mode = #tpu.pipeline_mode<synchronous>, transform_indices = @transform_2, window_bounds = array<i64: 1, 128>}, {pipeline_mode = #tpu.pipeline_mode<synchronous>, transform_indices = @transform_3, window_bounds = array<i64: 1, 128>}, {pipeline_mode = #tpu.pipeline_mode<synchronous>, transform_indices = @transform_4, window_bounds = array<i64: 1, 128>}, {pipeline_mode = #tpu.pipeline_mode<synchronous>, transform_indices = @transform_5, window_bounds = array<i64: 128, 4>}, {pipeline_mode = #tpu.pipeline_mode<synchronous>, transform_indices = @transform_6, window_bounds = array<i64: 4, 128>}, {transform_indices = @transform_7, window_bounds = array<i64: 1, 256, 128>}]} {
    %c0 = arith.constant 0 : index
    %c0_0 = arith.constant 0 : index
    %c0_1 = arith.constant 0 : index
    %c0_2 = arith.constant 0 : index
    %0 = vector.load %arg1[%c0, %c0_0, %c0_1, %c0_2] : memref<1x18x18x16xbf16, #tpu.memory_space<vmem>>, vector<1x18x18x16xbf16>
    %1 = vector.shape_cast %0 : vector<1x18x18x16xbf16> to vector<18x18x16xbf16>
    %2 = vector.extract_strided_slice %1 {offsets = [0, 0, 0], sizes = [16, 16, 16], strides = [1, 1, 1]} : vector<18x18x16xbf16> to vector<16x16x16xbf16>
    %3 = vector.shape_cast %2 : vector<16x16x16xbf16> to vector<256x16xbf16>
    %4 = vector.extract_strided_slice %1 {offsets = [0, 1, 0], sizes = [16, 16, 16], strides = [1, 1, 1]} : vector<18x18x16xbf16> to vector<16x16x16xbf16>
    %5 = vector.shape_cast %4 : vector<16x16x16xbf16> to vector<256x16xbf16>
    %6 = vector.extract_strided_slice %1 {offsets = [0, 2, 0], sizes = [16, 16, 16], strides = [1, 1, 1]} : vector<18x18x16xbf16> to vector<16x16x16xbf16>
    %7 = vector.shape_cast %6 : vector<16x16x16xbf16> to vector<256x16xbf16>
    %8 = vector.extract_strided_slice %1 {offsets = [1, 0, 0], sizes = [16, 16, 16], strides = [1, 1, 1]} : vector<18x18x16xbf16> to vector<16x16x16xbf16>
    %9 = vector.shape_cast %8 : vector<16x16x16xbf16> to vector<256x16xbf16>
    %10 = vector.extract_strided_slice %1 {offsets = [1, 1, 0], sizes = [16, 16, 16], strides = [1, 1, 1]} : vector<18x18x16xbf16> to vector<16x16x16xbf16>
    %11 = vector.shape_cast %10 : vector<16x16x16xbf16> to vector<256x16xbf16>
    %12 = vector.extract_strided_slice %1 {offsets = [1, 2, 0], sizes = [16, 16, 16], strides = [1, 1, 1]} : vector<18x18x16xbf16> to vector<16x16x16xbf16>
    %13 = vector.shape_cast %12 : vector<16x16x16xbf16> to vector<256x16xbf16>
    %14 = vector.extract_strided_slice %1 {offsets = [2, 0, 0], sizes = [16, 16, 16], strides = [1, 1, 1]} : vector<18x18x16xbf16> to vector<16x16x16xbf16>
    %15 = vector.shape_cast %14 : vector<16x16x16xbf16> to vector<256x16xbf16>
    %16 = vector.extract_strided_slice %1 {offsets = [2, 1, 0], sizes = [16, 16, 16], strides = [1, 1, 1]} : vector<18x18x16xbf16> to vector<16x16x16xbf16>
    %17 = vector.shape_cast %16 : vector<16x16x16xbf16> to vector<256x16xbf16>
    %18 = vector.extract_strided_slice %1 {offsets = [2, 2, 0], sizes = [16, 16, 16], strides = [1, 1, 1]} : vector<18x18x16xbf16> to vector<16x16x16xbf16>
    %19 = vector.shape_cast %18 : vector<16x16x16xbf16> to vector<256x16xbf16>
    %20 = tpu.concatenate %3, %5, %7, %9, %11, %13, %15, %17, %19 in 1 : vector<256x16xbf16>, vector<256x16xbf16>, vector<256x16xbf16>, vector<256x16xbf16>, vector<256x16xbf16>, vector<256x16xbf16>, vector<256x16xbf16>, vector<256x16xbf16>, vector<256x16xbf16> -> vector<256x144xbf16>
    %c0_3 = arith.constant 0 : index
    %c0_4 = arith.constant 0 : index
    %21 = vector.load %arg2[%c0_3, %c0_4] : memref<144x128xbf16, #tpu.memory_space<vmem>>, vector<144x128xbf16>
    %cst = arith.constant dense<0.000000e+00> : vector<256x128xf32>
    %22 = tpu.matmul %20, %21, %cst {dimension_numbers = #tpu.dot_dimension_numbers<[1], [0], [0], [1], [0, 0, 1, 1], [], []>} : vector<256x144xbf16>, vector<144x128xbf16>, vector<256x128xf32> -> vector<256x128xf32>
    %c0_5 = arith.constant 0 : index
    %c0_6 = arith.constant 0 : index
    %23 = vector.load %arg3[%c0_5, %c0_6] : memref<1x128xf32, #tpu.memory_space<vmem>>, vector<1x128xf32>
    %cst_7 = arith.constant dense<0.000000e+00> : vector<128xf32>
    %24 = vector.multi_reduction <add>, %22, %cst_7 [0] : vector<256x128xf32> to vector<128xf32>
    %25 = vector.shape_cast %24 : vector<128xf32> to vector<1x128xf32>
    %26 = arith.mulf %22, %22 : vector<256x128xf32>
    %cst_8 = arith.constant dense<0.000000e+00> : vector<128xf32>
    %27 = vector.multi_reduction <add>, %26, %cst_8 [0] : vector<256x128xf32> to vector<128xf32>
    %28 = vector.shape_cast %27 : vector<128xf32> to vector<1x128xf32>
    %cst_9 = arith.constant 2.560000e+02 : f32
    %29 = vector.broadcast %cst_9 : f32 to vector<1x128xf32>
    %30 = arith.mulf %29, %23 : vector<1x128xf32>
    %31 = arith.addf %25, %30 : vector<1x128xf32>
    %cst_10 = arith.constant 2.000000e+00 : f32
    %32 = vector.broadcast %cst_10 : f32 to vector<1x128xf32>
    %33 = arith.mulf %32, %23 : vector<1x128xf32>
    %34 = arith.mulf %33, %25 : vector<1x128xf32>
    %35 = arith.addf %28, %34 : vector<1x128xf32>
    %36 = arith.mulf %23, %23 : vector<1x128xf32>
    %cst_11 = arith.constant 2.560000e+02 : f32
    %37 = vector.broadcast %cst_11 : f32 to vector<1x128xf32>
    %38 = arith.mulf %37, %36 : vector<1x128xf32>
    %39 = arith.addf %35, %38 : vector<1x128xf32>
    %c0_12 = arith.constant 0 : index
    %c0_13 = arith.constant 0 : index
    %40 = vector.load %arg6[%c0_12, %c0_13] : memref<128x4xf32, #tpu.memory_space<vmem>>, vector<128x4xf32>
    %cst_14 = arith.constant dense<0.000000e+00> : vector<1x4xf32>
    %41 = tpu.matmul %31, %40, %cst_14 {dimension_numbers = #tpu.dot_dimension_numbers<[1], [0], [0], [1], [0, 0, 1, 1], [], []>} : vector<1x128xf32>, vector<128x4xf32>, vector<1x4xf32> -> vector<1x4xf32>
    %cst_15 = arith.constant 4.8828125E-4 : f32
    %42 = vector.broadcast %cst_15 : f32 to vector<1x4xf32>
    %43 = arith.mulf %41, %42 : vector<1x4xf32>
    %c0_16 = arith.constant 0 : index
    %c0_17 = arith.constant 0 : index
    %44 = vector.load %arg6[%c0_16, %c0_17] : memref<128x4xf32, #tpu.memory_space<vmem>>, vector<128x4xf32>
    %cst_18 = arith.constant dense<0.000000e+00> : vector<1x4xf32>
    %45 = tpu.matmul %39, %44, %cst_18 {dimension_numbers = #tpu.dot_dimension_numbers<[1], [0], [0], [1], [0, 0, 1, 1], [], []>} : vector<1x128xf32>, vector<128x4xf32>, vector<1x4xf32> -> vector<1x4xf32>
    %cst_19 = arith.constant 4.8828125E-4 : f32
    %46 = vector.broadcast %cst_19 : f32 to vector<1x4xf32>
    %47 = arith.mulf %45, %46 : vector<1x4xf32>
    %48 = arith.mulf %43, %43 : vector<1x4xf32>
    %49 = arith.subf %47, %48 : vector<1x4xf32>
    %cst_20 = arith.constant 9.99999974E-6 : f32
    %50 = vector.broadcast %cst_20 : f32 to vector<1x4xf32>
    %51 = arith.addf %49, %50 : vector<1x4xf32>
    %52 = math.rsqrt %51 : vector<1x4xf32>
    %c0_21 = arith.constant 0 : index
    %c0_22 = arith.constant 0 : index
    %53 = vector.load %arg7[%c0_21, %c0_22] : memref<4x128xf32, #tpu.memory_space<vmem>>, vector<4x128xf32>
    %cst_23 = arith.constant dense<0.000000e+00> : vector<1x128xf32>
    %54 = tpu.matmul %43, %53, %cst_23 {dimension_numbers = #tpu.dot_dimension_numbers<[1], [0], [0], [1], [0, 0, 1, 1], [], []>} : vector<1x4xf32>, vector<4x128xf32>, vector<1x128xf32> -> vector<1x128xf32>
    %c0_24 = arith.constant 0 : index
    %c0_25 = arith.constant 0 : index
    %55 = vector.load %arg7[%c0_24, %c0_25] : memref<4x128xf32, #tpu.memory_space<vmem>>, vector<4x128xf32>
    %cst_26 = arith.constant dense<0.000000e+00> : vector<1x128xf32>
    %56 = tpu.matmul %52, %55, %cst_26 {dimension_numbers = #tpu.dot_dimension_numbers<[1], [0], [0], [1], [0, 0, 1, 1], [], []>} : vector<1x4xf32>, vector<4x128xf32>, vector<1x128xf32> -> vector<1x128xf32>
    %c0_27 = arith.constant 0 : index
    %c0_28 = arith.constant 0 : index
    %57 = vector.load %arg4[%c0_27, %c0_28] : memref<1x128xf32, #tpu.memory_space<vmem>>, vector<1x128xf32>
    %58 = arith.mulf %56, %57 : vector<1x128xf32>
    %c0_29 = arith.constant 0 : index
    %c0_30 = arith.constant 0 : index
    %59 = vector.load %arg5[%c0_29, %c0_30] : memref<1x128xf32, #tpu.memory_space<vmem>>, vector<1x128xf32>
    %60 = arith.subf %23, %54 : vector<1x128xf32>
    %61 = arith.mulf %60, %58 : vector<1x128xf32>
    %62 = arith.addf %59, %61 : vector<1x128xf32>
    %63 = vector.broadcast %58 : vector<1x128xf32> to vector<256x128xf32>
    %64 = arith.mulf %22, %63 : vector<256x128xf32>
    %65 = vector.broadcast %62 : vector<1x128xf32> to vector<256x128xf32>
    %66 = arith.addf %64, %65 : vector<256x128xf32>
    %cst_31 = arith.constant 0.000000e+00 : f32
    %67 = vector.broadcast %cst_31 : f32 to vector<256x128xf32>
    %68 = arith.maximumf %66, %67 : vector<256x128xf32>
    %69 = arith.truncf %68 : vector<256x128xf32> to vector<256x128xbf16>
    %c0_32 = arith.constant 0 : index
    %c0_33 = arith.constant 0 : index
    %c0_34 = arith.constant 0 : index
    %70 = vector.load %arg8[%c0_32, %c0_33, %c0_34] : memref<1x256x128xbf16, #tpu.memory_space<vmem>>, vector<1x256x128xbf16>
    %71 = vector.shape_cast %70 : vector<1x256x128xbf16> to vector<256x128xbf16>
    %72 = vector.shape_cast %69 : vector<256x128xbf16> to vector<1x256x128xbf16>
    tpu.vector_store %arg8[%c0_32, %c0_33, %c0_34], %72 {strides = array<i32>} : memref<1x256x128xbf16, #tpu.memory_space<vmem>>, vector<1x256x128xbf16>,
    return
  }
  func.func @transform_0(%arg0: i32) -> (i32, i32, i32, i32) {
    %c0_i32 = arith.constant 0 : i32
    %c0_i32_0 = arith.constant 0 : i32
    %c0_i32_1 = arith.constant 0 : i32
    %c0_i32_2 = arith.constant 0 : i32
    return %arg0, %c0_i32, %c0_i32_0, %c0_i32_1 : i32, i32, i32, i32
  }
  func.func @transform_1(%arg0: i32) -> (i32, i32) {
    %c0_i32 = arith.constant 0 : i32
    %c0_i32_0 = arith.constant 0 : i32
    %c0_i32_1 = arith.constant 0 : i32
    return %c0_i32, %c0_i32_0 : i32, i32
  }
  func.func @transform_2(%arg0: i32) -> (i32, i32) {
    %c0_i32 = arith.constant 0 : i32
    %c0_i32_0 = arith.constant 0 : i32
    %c0_i32_1 = arith.constant 0 : i32
    return %c0_i32, %c0_i32_0 : i32, i32
  }
  func.func @transform_3(%arg0: i32) -> (i32, i32) {
    %c0_i32 = arith.constant 0 : i32
    %c0_i32_0 = arith.constant 0 : i32
    %c0_i32_1 = arith.constant 0 : i32
    return %c0_i32, %c0_i32_0 : i32, i32
  }
  func.func @transform_4(%arg0: i32) -> (i32, i32) {
    %c0_i32 = arith.constant 0 : i32
    %c0_i32_0 = arith.constant 0 : i32
    %c0_i32_1 = arith.constant 0 : i32
    return %c0_i32, %c0_i32_0 : i32, i32
  }
  func.func @transform_5(%arg0: i32) -> (i32, i32) {
    %c0_i32 = arith.constant 0 : i32
    %c0_i32_0 = arith.constant 0 : i32
    %c0_i32_1 = arith.constant 0 : i32
    return %c0_i32, %c0_i32_0 : i32, i32
  }
  func.func @transform_6(%arg0: i32) -> (i32, i32) {
    %c0_i32 = arith.constant 0 : i32
    %c0_i32_0 = arith.constant 0 : i32
    %c0_i32_1 = arith.constant 0 : i32
    return %c0_i32, %c0_i32_0 : i32, i32
  }
  func.func @transform_7(%arg0: i32) -> (i32, i32, i32) {
    %c0_i32 = arith.constant 0 : i32
    %c0_i32_0 = arith.constant 0 : i32
    %c0_i32_1 = arith.constant 0 : i32
    return %arg0, %c0_i32, %c0_i32_0 : i32, i32, i32
  }
}

</mosaic_0001>

<llo_original>
// kernel: unet_conv_layer.1
$region0: #{unet_conv_layer.1}
  #allocation0 [shape = 'u32[]', space=smem, size = 0x4, offset = 0x4, fixed_abs, tag = 'smem constant byte address 0x4 - core index']
  #allocation1 [shape = 'u32[144,128]{1,0:T(1,128)}', space=vmem, size = 0x12000, scoped, tag = 'internal scratch']
  %s0 = inlined_call_operand.vmem [shape: bf16[2,18,18,16], index: 0, kind: input, shape index: {}]
  %s1 = inlined_call_operand.vmem [shape: bf16[144,128], index: 1, kind: input, shape index: {}]
  %s2 = inlined_call_operand.vmem [shape: f32[1,128], index: 2, kind: input, shape index: {}]
  %s3 = inlined_call_operand.vmem [shape: f32[1,128], index: 3, kind: input, shape index: {}]
  %s4 = inlined_call_operand.vmem [shape: f32[1,128], index: 4, kind: input, shape index: {}]
  %s5 = inlined_call_operand.vmem [shape: f32[128,4], index: 5, kind: input, shape index: {}]
  %s6 = inlined_call_operand.vmem [shape: f32[4,128], index: 6, kind: input, shape index: {}]
  %s7 = inlined_call_operand.hbm [shape: bf16[2,256,128], index: 7, kind: output, shape index: {}]
  %s8 = sld [smem:[#allocation0]]
  $region61: #{unet_conv_layer.1} parent=0
    _
  %s10 = ssub.s32 1, %s8
  %s11 = scalar_select 0, %s10, %s8
  $region1: #{unet_conv_layer.1} parent=0
    #allocation2 [shape = 'u8[131072]{0}', space=vmem, size = 0x20000, scoped, tag = 'output window, operand 0']
    #allocation3 [shape = 's32[2]{0}', space=sflag, size = 0x8, scoped, tag = 'scoped memory for unet_conv_layer.1']
    %12 = vsyncpa [#allocation3], 0
    %s13 = scalar_lea.sflag [#allocation3], 1
    %14 = vsyncpa %s13, 0
    loop: start=0, step=1, limit=4
    $region2: #{unet_conv_layer.1} parent=1 // loop_pre_header
      _
    $region3: #{unet_conv_layer.1} parent=1 // loop_header
      %s16 = sphi 0, %s20
      %p17 = scmp.ge.s32.totalorder %s16, 4
      %s26 = sphi 0, %s28
      %s29 = sphi 0, %s26
      %s30 = sphi 0, %s29
      %s46 = sphi 0, %s30
      %s50 = sphi 0, %s50
      %s52 = sphi 0, %s50
      %s53 = sphi 0, %s52
      %s67 = sphi 0, %s53
      %s71 = sphi 0, %s71
      %s73 = sphi 0, %s71
      %s74 = sphi 0, %s73
      %s88 = sphi 0, %s74
      %s92 = sphi 0, %s92
      %s94 = sphi 0, %s92
      %s95 = sphi 0, %s94
      %s109 = sphi 0, %s95
      %s113 = sphi 0, %s113
      %s115 = sphi 0, %s113
      %s116 = sphi 0, %s115
      %s130 = sphi 0, %s116
      %s134 = sphi 0, %s134
      %s136 = sphi 0, %s134
      %s137 = sphi 0, %s136
      %s151 = sphi 0, %s137
      %s155 = sphi 0, %s155
      %s157 = sphi 0, %s155
      %s158 = sphi 0, %s157
      %s172 = sphi 0, %s158
      %s178 = sphi 0, %s180
      %s181 = sphi 0, %s178
      %s182 = sphi 0, %s181
      %s198 = sphi 0, %s182
    $region4: #{unet_conv_layer.1} parent=1 // loop_header_branch
      %19 = sbr.rel (%p17) target = $region8
    $region5: #{unet_conv_layer.1} parent=1 // loop_body
      %s21 = ssub.s32 %s16, 1
      %s22 = ssub.s32 %s16, 2
      %s23 = sadd.s32 %s16, 1
      %s24 = ssub.s32 %s16, %s23
      %p25 = scmp.eq.s32.totalorder %s24, 0
      %s27 = sadd.s32 %s26, 1
      %s28 = scalar_select %p25, %s26, %s27
      %p31 = pneg %p25
      %p32 = scmp.eq.s32.totalorder %s16, 1
      %p33 = por %p31, %p32
      %p34 = scmp.ne.s32.totalorder %s26, %s29
      %p35 = scmp.eq.s32.totalorder %s16, 0
      %p36 = por %p34, %p35
      %p37 = scmp.ne.s32.totalorder %s26, %s29
      %p38 = scmp.eq.s32.totalorder %s21, 1
      %p39 = por %p37, %p38
      %p40 = scmp.ne.s32.totalorder %s29, %s30
      %p41 = scmp.eq.s32.totalorder %s21, 0
      %p42 = por %p40, %p41
      %p43 = scmp.ne.s32.totalorder %s29, %s30
      %p44 = scmp.eq.s32.totalorder %s22, 1
      %p45 = por %p43, %p44
      %p47 = scmp.ne.s32.totalorder %s30, %s46
      %p48 = scmp.eq.s32.totalorder %s22, 0
      %p49 = por %p47, %p48
      %s51 = sadd.s32 %s50, 1
      %p54 = scmp.eq.s32.totalorder %s16, 1
      %p55 = scmp.ne.s32.totalorder %s50, %s52
      %p56 = scmp.eq.s32.totalorder %s16, 0
      %p57 = por %p55, %p56
      %p58 = scmp.ne.s32.totalorder %s50, %s52
      %p59 = scmp.eq.s32.totalorder %s21, 1
      %p60 = por %p58, %p59
      %p61 = scmp.ne.s32.totalorder %s52, %s53
      %p62 = scmp.eq.s32.totalorder %s21, 0
      %p63 = por %p61, %p62
      %p64 = scmp.ne.s32.totalorder %s52, %s53
      %p65 = scmp.eq.s32.totalorder %s22, 1
      %p66 = por %p64, %p65
      %p68 = scmp.ne.s32.totalorder %s53, %s67
      %p69 = scmp.eq.s32.totalorder %s22, 0
      %p70 = por %p68, %p69
      %s72 = sadd.s32 %s71, 1
      %p75 = scmp.eq.s32.totalorder %s16, 1
      %p76 = scmp.ne.s32.totalorder %s71, %s73
      %p77 = scmp.eq.s32.totalorder %s16, 0
      %p78 = por %p76, %p77
      %p79 = scmp.ne.s32.totalorder %s71, %s73
      %p80 = scmp.eq.s32.totalorder %s21, 1
      %p81 = por %p79, %p80
      %p82 = scmp.ne.s32.totalorder %s73, %s74
      %p83 = scmp.eq.s32.totalorder %s21, 0
      %p84 = por %p82, %p83
      %p85 = scmp.ne.s32.totalorder %s73, %s74
      %p86 = scmp.eq.s32.totalorder %s22, 1
      %p87 = por %p85, %p86
      %p89 = scmp.ne.s32.totalorder %s74, %s88
      %p90 = scmp.eq.s32.totalorder %s22, 0
      %p91 = por %p89, %p90
      %s93 = sadd.s32 %s92, 1
      %p96 = scmp.eq.s32.totalorder %s16, 1
      %p97 = scmp.ne.s32.totalorder %s92, %s94
      %p98 = scmp.eq.s32.totalorder %s16, 0
      %p99 = por %p97, %p98
      %p100 = scmp.ne.s32.totalorder %s92, %s94
      %p101 = scmp.eq.s32.totalorder %s21, 1
      %p102 = por %p100, %p101
      %p103 = scmp.ne.s32.totalorder %s94, %s95
      %p104 = scmp.eq.s32.totalorder %s21, 0
      %p105 = por %p103, %p104
      %p106 = scmp.ne.s32.totalorder %s94, %s95
      %p107 = scmp.eq.s32.totalorder %s22, 1
      %p108 = por %p106, %p107
      %p110 = scmp.ne.s32.totalorder %s95, %s109
      %p111 = scmp.eq.s32.totalorder %s22, 0
      %p112 = por %p110, %p111
      %s114 = sadd.s32 %s113, 1
      %p117 = scmp.eq.s32.totalorder %s16, 1
      %p118 = scmp.ne.s32.totalorder %s113, %s115
      %p119 = scmp.eq.s32.totalorder %s16, 0
      %p120 = por %p118, %p119
      %p121 = scmp.ne.s32.totalorder %s113, %s115
      %p122 = scmp.eq.s32.totalorder %s21, 1
      %p123 = por %p121, %p122
      %p124 = scmp.ne.s32.totalorder %s115, %s116
      %p125 = scmp.eq.s32.totalorder %s21, 0
      %p126 = por %p124, %p125
      %p127 = scmp.ne.s32.totalorder %s115, %s116
      %p128 = scmp.eq.s32.totalorder %s22, 1
      %p129 = por %p127, %p128
      %p131 = scmp.ne.s32.totalorder %s116, %s130
      %p132 = scmp.eq.s32.totalorder %s22, 0
      %p133 = por %p131, %p132
      %s135 = sadd.s32 %s134, 1
      %p138 = scmp.eq.s32.totalorder %s16, 1
      %p139 = scmp.ne.s32.totalorder %s134, %s136
      %p140 = scmp.eq.s32.totalorder %s16, 0
      %p141 = por %p139, %p140
      %p142 = scmp.ne.s32.totalorder %s134, %s136
      %p143 = scmp.eq.s32.totalorder %s21, 1
      %p144 = por %p142, %p143
      %p145 = scmp.ne.s32.totalorder %s136, %s137
      %p146 = scmp.eq.s32.totalorder %s21, 0
      %p147 = por %p145, %p146
      %p148 = scmp.ne.s32.totalorder %s136, %s137
      %p149 = scmp.eq.s32.totalorder %s22, 1
      %p150 = por %p148, %p149
      %p152 = scmp.ne.s32.totalorder %s137, %s151
      %p153 = scmp.eq.s32.totalorder %s22, 0
      %p154 = por %p152, %p153
      %s156 = sadd.s32 %s155, 1
      %p159 = scmp.eq.s32.totalorder %s16, 1
      %p160 = scmp.ne.s32.totalorder %s155, %s157
      %p161 = scmp.eq.s32.totalorder %s16, 0
      %p162 = por %p160, %p161
      %p163 = scmp.ne.s32.totalorder %s155, %s157
      %p164 = scmp.eq.s32.totalorder %s21, 1
      %p165 = por %p163, %p164
      %p166 = scmp.ne.s32.totalorder %s157, %s158
      %p167 = scmp.eq.s32.totalorder %s21, 0
      %p168 = por %p166, %p167
      %p169 = scmp.ne.s32.totalorder %s157, %s158
      %p170 = scmp.eq.s32.totalorder %s22, 1
      %p171 = por %p169, %p170
      %p173 = scmp.ne.s32.totalorder %s158, %s172
      %p174 = scmp.eq.s32.totalorder %s22, 0
      %p175 = por %p173, %p174
      %s176 = ssub.s32 %s16, %s23
      %p177 = scmp.eq.s32.totalorder %s176, 0
      %s179 = sadd.s32 %s178, 1
      %s180 = scalar_select %p177, %s178, %s179
      %p183 = pneg %p177
      %p184 = scmp.eq.s32.totalorder %s16, 1
      %p185 = por %p183, %p184
      %p186 = scmp.ne.s32.totalorder %s178, %s181
      %p187 = scmp.eq.s32.totalorder %s16, 0
      %p188 = por %p186, %p187
      %p189 = scmp.ne.s32.totalorder %s178, %s181
      %p190 = scmp.eq.s32.totalorder %s21, 1
      %p191 = por %p189, %p190
      %p192 = scmp.ne.s32.totalorder %s181, %s182
      %p193 = scmp.eq.s32.totalorder %s21, 0
      %p194 = por %p192, %p193
      %p195 = scmp.ne.s32.totalorder %s181, %s182
      %p196 = scmp.eq.s32.totalorder %s22, 1
      %p197 = por %p195, %p196
      %p199 = scmp.ne.s32.totalorder %s182, %s198
      %p200 = scmp.eq.s32.totalorder %s22, 0
      %p201 = por %p199, %p200
      %p202 = scmp.le.s32.totalorder 1, %s16
      %p203 = scmp.lt.s32.totalorder %s16, 3
      %p204 = pnand %p202, %p203
      %p205 = pneg %p204
      // Predicated region
      $region9: #{unet_conv_layer.1} parent=5 // pred_check
        _
      $region10: #{unet_conv_layer.1} parent=5 // pred_check_branch
        %207 = sbr.rel (%p204) target = $region12
      $region11: #{unet_conv_layer.1} parent=5 // pred_region
        %s208 = ssub.s32 %s16, 1
        // Predicated region
        $region13: #{unet_conv_layer.1} parent=11 // pred_check
          %p209 = pneg %p63
        $region14: #{unet_conv_layer.1} parent=11 // pred_check_branch
          %211 = sbr.rel (%p209) target = $region16
        $region15: #{unet_conv_layer.1} parent=11 // pred_region
          _
        $region16: #{unet_conv_layer.1} parent=11 // pred_fallthru
          _
        // Predicated region
        $region17: #{unet_conv_layer.1} parent=11 // pred_check
          %p212 = pneg %p84
        $region18: #{unet_conv_layer.1} parent=11 // pred_check_branch
          %214 = sbr.rel (%p212) target = $region20
        $region19: #{unet_conv_layer.1} parent=11 // pred_region
          _
        $region20: #{unet_conv_layer.1} parent=11 // pred_fallthru
          _
        // Predicated region
        $region21: #{unet_conv_layer.1} parent=11 // pred_check
          %p215 = pneg %p105
        $region22: #{unet_conv_layer.1} parent=11 // pred_check_branch
          %217 = sbr.rel (%p215) target = $region24
        $region23: #{unet_conv_layer.1} parent=11 // pred_region
          _
        $region24: #{unet_conv_layer.1} parent=11 // pred_fallthru
          _
        // Predicated region
        $region25: #{unet_conv_layer.1} parent=11 // pred_check
          %p218 = pneg %p126
        $region26: #{unet_conv_layer.1} parent=11 // pred_check_branch
          %220 = sbr.rel (%p218) target = $region28
        $region27: #{unet_conv_layer.1} parent=11 // pred_region
          _
        $region28: #{unet_conv_layer.1} parent=11 // pred_fallthru
          _
        // Predicated region
        $region29: #{unet_conv_layer.1} parent=11 // pred_check
          %p221 = pneg %p147
        $region30: #{unet_conv_layer.1} parent=11 // pred_check_branch
          %223 = sbr.rel (%p221) target = $region32
        $region31: #{unet_conv_layer.1} parent=11 // pred_region
          _
        $region32: #{unet_conv_layer.1} parent=11 // pred_fallthru
          _
        // Predicated region
        $region33: #{unet_conv_layer.1} parent=11 // pred_check
          %p224 = pneg %p168
        $region34: #{unet_conv_layer.1} parent=11 // pred_check_branch
          %226 = sbr.rel (%p224) target = $region36
        $region35: #{unet_conv_layer.1} parent=11 // pred_region
          _
        $region36: #{unet_conv_layer.1} parent=11 // pred_fallthru
          _
      $region12: #{unet_conv_layer.1} parent=5 // pred_fallthru
        _
      %p227 = scmp.lt.s32.totalorder %s16, 2
      // Predicated region
      $region37: #{unet_conv_layer.1} parent=5 // pred_check
        %p228 = pneg %p227
      $region38: #{unet_conv_layer.1} parent=5 // pred_check_branch
        %230 = sbr.rel (%p228) target = $region40
      $region39: #{unet_conv_layer.1} parent=5 // pred_region
        // Predicated region
        $region41: #{unet_conv_layer.1} parent=39 // pred_check
          %p231 = pneg %p36
        $region42: #{unet_conv_layer.1} parent=39 // pred_check_branch
          %233 = sbr.rel (%p231) target = $region44
        $region43: #{unet_conv_layer.1} parent=39 // pred_region
          %p234 = scmp.lt.s32.totalorder %s16, 1
          %s235 = scalar_select %p234, %s16, 1
          %s236 = smul.addr %s235, 54
          %s237 = smul.addr %s236, 4
          %s238 = scalar_lea.vmem %s0, %s237
        $region44: #{unet_conv_layer.1} parent=39 // pred_fallthru
          _
      $region40: #{unet_conv_layer.1} parent=5 // pred_fallthru
        _
      %p239 = scmp.le.s32.totalorder 1, %s16
      %p240 = scmp.lt.s32.totalorder %s16, 3
      %p241 = pnand %p239, %p240
      %p242 = pneg %p241
      // Predicated region
      $region45: #{unet_conv_layer.1} parent=5 // pred_check
        _
      $region46: #{unet_conv_layer.1} parent=5 // pred_check_branch
        %244 = sbr.rel (%p241) target = $region48
      $region47: #{unet_conv_layer.1} parent=5 // pred_region
        %s245 = ssub.s32 %s16, 1
        %p246 = scmp.lt.s32.totalorder %s21, 1
        %s247 = scalar_select %p246, %s21, 1
        %s248 = smul.addr %s247, 54
        %s249 = smul.addr %s248, 4
        %s250 = scalar_lea.vmem %s0, %s249
        %p251 = pneg %p42
        %p252 = pneg %p39
        %p253 = pneg %p63
        %p254 = pneg %p60
        %p255 = pneg %p84
        %p256 = pneg %p81
        %p257 = pneg %p105
        %p258 = pneg %p102
        %p259 = pneg %p126
        %p260 = pneg %p123
        %p261 = pneg %p147
        %p262 = pneg %p144
        %p263 = pneg %p168
        %p264 = pneg %p165
        %p265 = pneg %p194
        %p266 = pneg %p191
        %s267 = sand.u32 %s181, 1
        %s268 = scalar_lea.sflag [#allocation3], %s267
        %s269 = sand.u32 %s181, 1
        %s270 = smul.addr %s269, 128
        %s271 = scalar_lea.vmem [#allocation2], %s270
        %p272 = scmp.lt.s32.totalorder %s21, 1
        %s273 = scalar_select %p272, %s21, 1
        %s274 = smul.addr %s273, 54
        %s275 = smul.addr %s274, 4
        %s276 = scalar_lea.vmem %s0, %s275
        %v278 = vld [vmem:[%s276] sm:$0xf]
        %v279 = vld [vmem:[%s276 + $0x4] sm:$0xf]
        %v280 = vld [vmem:[%s276 + $0x8] sm:$0x1]
        %v281 = vld [vmem:[%s276 + $0xc] sm:$0xf]
        %v282 = vld [vmem:[%s276 + $0x10] sm:$0xf]
        %v283 = vld [vmem:[%s276 + $0x14] sm:$0x1]
        %v284 = vld [vmem:[%s276 + $0x18] sm:$0xf]
        %v285 = vld [vmem:[%s276 + $0x1c] sm:$0xf]
        %v286 = vld [vmem:[%s276 + $0x20] sm:$0x1]
        %v287 = vld [vmem:[%s276 + $0x24] sm:$0xf]
        %v288 = vld [vmem:[%s276 + $0x28] sm:$0xf]
        %v289 = vld [vmem:[%s276 + $0x2c] sm:$0x1]
        %v290 = vld [vmem:[%s276 + $0x30] sm:$0xf]
        %v291 = vld [vmem:[%s276 + $0x34] sm:$0xf]
        %v292 = vld [vmem:[%s276 + $0x38] sm:$0x1]
        %v293 = vld [vmem:[%s276 + $0x3c] sm:$0xf]
        %v294 = vld [vmem:[%s276 + $0x40] sm:$0xf]
        %v295 = vld [vmem:[%s276 + $0x44] sm:$0x1]
        %v296 = vld [vmem:[%s276 + $0x48] sm:$0xf]
        %v297 = vld [vmem:[%s276 + $0x4c] sm:$0xf]
        %v298 = vld [vmem:[%s276 + $0x50] sm:$0x1]
        %v299 = vld [vmem:[%s276 + $0x54] sm:$0xf]
        %v300 = vld [vmem:[%s276 + $0x58] sm:$0xf]
        %v301 = vld [vmem:[%s276 + $0x5c] sm:$0x1]
        %v302 = vld [vmem:[%s276 + $0x60] sm:$0xf]
        %v303 = vld [vmem:[%s276 + $0x64] sm:$0xf]
        %v304 = vld [vmem:[%s276 + $0x68] sm:$0x1]
        %v305 = vld [vmem:[%s276 + $0x6c] sm:$0xf]
        %v306 = vld [vmem:[%s276 + $0x70] sm:$0xf]
        %v307 = vld [vmem:[%s276 + $0x74] sm:$0x1]
        %v308 = vld [vmem:[%s276 + $0x78] sm:$0xf]
        %v309 = vld [vmem:[%s276 + $0x7c] sm:$0xf]
        %v310 = vld [vmem:[%s276 + $0x80] sm:$0x1]
        %v311 = vld [vmem:[%s276 + $0x84] sm:$0xf]
        %v312 = vld [vmem:[%s276 + $0x88] sm:$0xf]
        %v313 = vld [vmem:[%s276 + $0x8c] sm:$0x1]
        %v314 = vld [vmem:[%s276 + $0x90] sm:$0xf]
        %v315 = vld [vmem:[%s276 + $0x94] sm:$0xf]
        %v316 = vld [vmem:[%s276 + $0x98] sm:$0x1]
        %v317 = vld [vmem:[%s276 + $0x9c] sm:$0xf]
        %v318 = vld [vmem:[%s276 + $0xa0] sm:$0xf]
        %v319 = vld [vmem:[%s276 + $0xa4] sm:$0x1]
        %v320 = vld [vmem:[%s276 + $0xa8] sm:$0xf]
        %v321 = vld [vmem:[%s276 + $0xac] sm:$0xf]
        %v322 = vld [vmem:[%s276 + $0xb0] sm:$0x1]
        %v323 = vld [vmem:[%s276 + $0xb4] sm:$0xf]
        %v324 = vld [vmem:[%s276 + $0xb8] sm:$0xf]
        %v325 = vld [vmem:[%s276 + $0xbc] sm:$0x1]
        %v326 = vld [vmem:[%s276 + $0xc0] sm:$0xf]
        %v327 = vld [vmem:[%s276 + $0xc4] sm:$0xf]
        %v328 = vld [vmem:[%s276 + $0xc8] sm:$0x1]
        %v329 = vld [vmem:[%s276 + $0xcc] sm:$0xf]
        %v330 = vld [vmem:[%s276 + $0xd0] sm:$0xf]
        %v331 = vld [vmem:[%s276 + $0xd4] sm:$0x1]
        %vm332 = vsmask.f32 3328
        %vm333 = vsmask.f32 7440
        %vm334 = vmor %vm332, %vm333
        %v336 = vshrl.u32 %v278, 16
        %v338 = vrot.slane %v336, 4
        %v339 = vshll.u32 %v278, 16
        %v341 = vrot.slane %v339, 5
        %v342 = vor.u32 %v338, %v341
        %v343 = vrot.slane %v342, 4
        %v345 = vshll.u32 %v279, 16
        %v347 = vrot.slane %v345, 5
        %v348 = vsel %vm334, %v343, %v347
        %v349 = vshrl.u32 %v279, 16
        %v351 = vrot.slane %v349, 4
        %v352 = vor.u32 %v351, %v347
        %v353 = vrot.slane %v352, 4
        %v355 = vshll.u32 %v280, 16
        %v357 = vrot.slane %v355, 5
        %v358 = vsel %vm334, %v353, %v357
        %v360 = vshrl.u32 %v281, 16
        %v362 = vrot.slane %v360, 4
        %v363 = vshll.u32 %v281, 16
        %v365 = vrot.slane %v363, 5
        %v366 = vor.u32 %v362, %v365
        %v367 = vrot.slane %v366, 4
        %v369 = vshll.u32 %v282, 16
        %v371 = vrot.slane %v369, 5
        %v372 = vsel %vm334, %v367, %v371
        %v373 = vshrl.u32 %v282, 16
        %v375 = vrot.slane %v373, 4
        %v376 = vor.u32 %v375, %v371
        %v377 = vrot.slane %v376, 4
        %v379 = vshll.u32 %v283, 16
        %v381 = vrot.slane %v379, 5
        %v382 = vsel %vm334, %v377, %v381
        %v384 = vshrl.u32 %v284, 16
        %v386 = vrot.slane %v384, 4
        %v387 = vshll.u32 %v284, 16
        %v389 = vrot.slane %v387, 5
        %v390 = vor.u32 %v386, %v389
        %v391 = vrot.slane %v390, 4
        %v393 = vshll.u32 %v285, 16
        %v395 = vrot.slane %v393, 5
        %v396 = vsel %vm334, %v391, %v395
        %v397 = vshrl.u32 %v285, 16
        %v399 = vrot.slane %v397, 4
        %v400 = vor.u32 %v399, %v395
        %v401 = vrot.slane %v400, 4
        %v403 = vshll.u32 %v286, 16
        %v405 = vrot.slane %v403, 5
        %v406 = vsel %vm334, %v401, %v405
        %v408 = vshrl.u32 %v287, 16
        %v410 = vrot.slane %v408, 4
        %v411 = vshll.u32 %v287, 16
        %v413 = vrot.slane %v411, 5
        %v414 = vor.u32 %v410, %v413
        %v415 = vrot.slane %v414, 4
        %v417 = vshll.u32 %v288, 16
        %v419 = vrot.slane %v417, 5
        %v420 = vsel %vm334, %v415, %v419
        %v421 = vshrl.u32 %v288, 16
        %v423 = vrot.slane %v421, 4
        %v424 = vor.u32 %v423, %v419
        %v425 = vrot.slane %v424, 4
        %v427 = vshll.u32 %v289, 16
        %v429 = vrot.slane %v427, 5
        %v430 = vsel %vm334, %v425, %v429
        %v432 = vshrl.u32 %v290, 16
        %v434 = vrot.slane %v432, 4
        %v435 = vshll.u32 %v290, 16
        %v437 = vrot.slane %v435, 5
        %v438 = vor.u32 %v434, %v437
        %v439 = vrot.slane %v438, 4
        %v441 = vshll.u32 %v291, 16
        %v443 = vrot.slane %v441, 5
        %v444 = vsel %vm334, %v439, %v443
        %v445 = vshrl.u32 %v291, 16
        %v447 = vrot.slane %v445, 4
        %v448 = vor.u32 %v447, %v443
        %v449 = vrot.slane %v448, 4
        %v451 = vshll.u32 %v292, 16
        %v453 = vrot.slane %v451, 5
        %v454 = vsel %vm334, %v449, %v453
        %v456 = vshrl.u32 %v293, 16
        %v458 = vrot.slane %v456, 4
        %v459 = vshll.u32 %v293, 16
        %v461 = vrot.slane %v459, 5
        %v462 = vor.u32 %v458, %v461
        %v463 = vrot.slane %v462, 4
        %v465 = vshll.u32 %v294, 16
        %v467 = vrot.slane %v465, 5
        %v468 = vsel %vm334, %v463, %v467
        %v469 = vshrl.u32 %v294, 16
        %v471 = vrot.slane %v469, 4
        %v472 = vor.u32 %v471, %v467
        %v473 = vrot.slane %v472, 4
        %v475 = vshll.u32 %v295, 16
        %v477 = vrot.slane %v475, 5
        %v478 = vsel %vm334, %v473, %v477
        %v480 = vshrl.u32 %v296, 16
        %v482 = vrot.slane %v480, 4
        %v483 = vshll.u32 %v296, 16
        %v485 = vrot.slane %v483, 5
        %v486 = vor.u32 %v482, %v485
        %v487 = vrot.slane %v486, 4
        %v489 = vshll.u32 %v297, 16
        %v491 = vrot.slane %v489, 5
        %v492 = vsel %vm334, %v487, %v491
        %v493 = vshrl.u32 %v297, 16
        %v495 = vrot.slane %v493, 4
        %v496 = vor.u32 %v495, %v491
        %v497 = vrot.slane %v496, 4
        %v499 = vshll.u32 %v298, 16
        %v501 = vrot.slane %v499, 5
        %v502 = vsel %vm334, %v497, %v501
        %v504 = vshrl.u32 %v299, 16
        %v506 = vrot.slane %v504, 4
        %v507 = vshll.u32 %v299, 16
        %v509 = vrot.slane %v507, 5
        %v510 = vor.u32 %v506, %v509
        %v511 = vrot.slane %v510, 4
        %v513 = vshll.u32 %v300, 16
        %v515 = vrot.slane %v513, 5
        %v516 = vsel %vm334, %v511, %v515
        %v517 = vshrl.u32 %v300, 16
        %v519 = vrot.slane %v517, 4
        %v520 = vor.u32 %v519, %v515
        %v521 = vrot.slane %v520, 4
        %v523 = vshll.u32 %v301, 16
        %v525 = vrot.slane %v523, 5
        %v526 = vsel %vm334, %v521, %v525
        %v528 = vshrl.u32 %v302, 16
        %v530 = vrot.slane %v528, 4
        %v531 = vshll.u32 %v302, 16
        %v533 = vrot.slane %v531, 5
        %v534 = vor.u32 %v530, %v533
        %v535 = vrot.slane %v534, 4
        %v537 = vshll.u32 %v303, 16
        %v539 = vrot.slane %v537, 5
        %v540 = vsel %vm334, %v535, %v539
        %v541 = vshrl.u32 %v303, 16
        %v543 = vrot.slane %v541, 4
        %v544 = vor.u32 %v543, %v539
        %v545 = vrot.slane %v544, 4
        %v547 = vshll.u32 %v304, 16
        %v549 = vrot.slane %v547, 5
        %v550 = vsel %vm334, %v545, %v549
        %v552 = vshrl.u32 %v305, 16
        %v554 = vrot.slane %v552, 4
        %v555 = vshll.u32 %v305, 16
        %v557 = vrot.slane %v555, 5
        %v558 = vor.u32 %v554, %v557
        %v559 = vrot.slane %v558, 4
        %v561 = vshll.u32 %v306, 16
        %v563 = vrot.slane %v561, 5
        %v564 = vsel %vm334, %v559, %v563
        %v565 = vshrl.u32 %v306, 16
        %v567 = vrot.slane %v565, 4
        %v568 = vor.u32 %v567, %v563
        %v569 = vrot.slane %v568, 4
        %v571 = vshll.u32 %v307, 16
        %v573 = vrot.slane %v571, 5
        %v574 = vsel %vm334, %v569, %v573
        %v576 = vshrl.u32 %v308, 16
        %v578 = vrot.slane %v576, 4
        %v579 = vshll.u32 %v308, 16
        %v581 = vrot.slane %v579, 5
        %v582 = vor.u32 %v578, %v581
        %v583 = vrot.slane %v582, 4
        %v585 = vshll.u32 %v309, 16
        %v587 = vrot.slane %v585, 5
        %v588 = vsel %vm334, %v583, %v587
        %v589 = vshrl.u32 %v309, 16
        %v591 = vrot.slane %v589, 4
        %v592 = vor.u32 %v591, %v587
        %v593 = vrot.slane %v592, 4
        %v595 = vshll.u32 %v310, 16
        %v597 = vrot.slane %v595, 5
        %v598 = vsel %vm334, %v593, %v597
        %v600 = vshrl.u32 %v311, 16
        %v602 = vrot.slane %v600, 4
        %v603 = vshll.u32 %v311, 16
        %v605 = vrot.slane %v603, 5
        %v606 = vor.u32 %v602, %v605
        %v607 = vrot.slane %v606, 4
        %v609 = vshll.u32 %v312, 16
        %v611 = vrot.slane %v609, 5
        %v612 = vsel %vm334, %v607, %v611
        %v613 = vshrl.u32 %v312, 16
        %v615 = vrot.slane %v613, 4
        %v616 = vor.u32 %v615, %v611
        %v617 = vrot.slane %v616, 4
        %v619 = vshll.u32 %v313, 16
        %v621 = vrot.slane %v619, 5
        %v622 = vsel %vm334, %v617, %v621
        %v624 = vshrl.u32 %v314, 16
        %v626 = vrot.slane %v624, 4
        %v627 = vshll.u32 %v314, 16
        %v629 = vrot.slane %v627, 5
        %v630 = vor.u32 %v626, %v629
        %v631 = vrot.slane %v630, 4
        %v633 = vshll.u32 %v315, 16
        %v635 = vrot.slane %v633, 5
        %v636 = vsel %vm334, %v631, %v635
        %v637 = vshrl.u32 %v315, 16
        %v639 = vrot.slane %v637, 4
        %v640 = vor.u32 %v639, %v635
        %v641 = vrot.slane %v640, 4
        %v643 = vshll.u32 %v316, 16
        %v645 = vrot.slane %v643, 5
        %v646 = vsel %vm334, %v641, %v645
        %v648 = vshrl.u32 %v317, 16
        %v650 = vrot.slane %v648, 4
        %v651 = vshll.u32 %v317, 16
        %v653 = vrot.slane %v651, 5
        %v654 = vor.u32 %v650, %v653
        %v655 = vrot.slane %v654, 4
        %v657 = vshll.u32 %v318, 16
        %v659 = vrot.slane %v657, 5
        %v660 = vsel %vm334, %v655, %v659
        %v661 = vshrl.u32 %v318, 16
        %v663 = vrot.slane %v661, 4
        %v664 = vor.u32 %v663, %v659
        %v665 = vrot.slane %v664, 4
        %v667 = vshll.u32 %v319, 16
        %v669 = vrot.slane %v667, 5
        %v670 = vsel %vm334, %v665, %v669
        %v672 = vshrl.u32 %v320, 16
        %v674 = vrot.slane %v672, 4
        %v675 = vshll.u32 %v320, 16
        %v677 = vrot.slane %v675, 5
        %v678 = vor.u32 %v674, %v677
        %v679 = vrot.slane %v678, 4
        %v681 = vshll.u32 %v321, 16
        %v683 = vrot.slane %v681, 5
        %v684 = vsel %vm334, %v679, %v683
        %v685 = vshrl.u32 %v321, 16
        %v687 = vrot.slane %v685, 4
        %v688 = vor.u32 %v687, %v683
        %v689 = vrot.slane %v688, 4
        %v691 = vshll.u32 %v322, 16
        %v693 = vrot.slane %v691, 5
        %v694 = vsel %vm334, %v689, %v693
        %v696 = vshrl.u32 %v323, 16
        %v698 = vrot.slane %v696, 4
        %v699 = vshll.u32 %v323, 16
        %v701 = vrot.slane %v699, 5
        %v702 = vor.u32 %v698, %v701
        %v703 = vrot.slane %v702, 4
        %v705 = vshll.u32 %v324, 16
        %v707 = vrot.slane %v705, 5
        %v708 = vsel %vm334, %v703, %v707
        %v709 = vshrl.u32 %v324, 16
        %v711 = vrot.slane %v709, 4
        %v712 = vor.u32 %v711, %v707
        %v713 = vrot.slane %v712, 4
        %v715 = vshll.u32 %v325, 16
        %v717 = vrot.slane %v715, 5
        %v718 = vsel %vm334, %v713, %v717
        %vm767 = vcmask 1042432
        %vm768 = vcmask 1046532
        %vm769 = vmor %vm767, %vm768
        %v770 = vrot.slane %v278, 5
        %v771 = vrot.slane %v770, 4
        %v772 = vrot.slane %v279, 5
        %v773 = vsel %vm769, %v771, %v772
        %v774 = vrot.slane %v772, 4
        %v775 = vrot.slane %v280, 5
        %v776 = vsel %vm769, %v774, %v775
        %v777 = vrot.slane %v281, 5
        %v778 = vrot.slane %v777, 4
        %v779 = vrot.slane %v282, 5
        %v780 = vsel %vm769, %v778, %v779
        %v781 = vrot.slane %v779, 4
        %v782 = vrot.slane %v283, 5
        %v783 = vsel %vm769, %v781, %v782
        %v784 = vrot.slane %v284, 5
        %v785 = vrot.slane %v784, 4
        %v786 = vrot.slane %v285, 5
        %v787 = vsel %vm769, %v785, %v786
        %v788 = vrot.slane %v786, 4
        %v789 = vrot.slane %v286, 5
        %v790 = vsel %vm769, %v788, %v789
        %v791 = vrot.slane %v287, 5
        %v792 = vrot.slane %v791, 4
        %v793 = vrot.slane %v288, 5
        %v794 = vsel %vm769, %v792, %v793
        %v795 = vrot.slane %v793, 4
        %v796 = vrot.slane %v289, 5
        %v797 = vsel %vm769, %v795, %v796
        %v798 = vrot.slane %v290, 5
        %v799 = vrot.slane %v798, 4
        %v800 = vrot.slane %v291, 5
        %v801 = vsel %vm769, %v799, %v800
        %v802 = vrot.slane %v800, 4
        %v803 = vrot.slane %v292, 5
        %v804 = vsel %vm769, %v802, %v803
        %v805 = vrot.slane %v293, 5
        %v806 = vrot.slane %v805, 4
        %v807 = vrot.slane %v294, 5
        %v808 = vsel %vm769, %v806, %v807
        %v809 = vrot.slane %v807, 4
        %v810 = vrot.slane %v295, 5
        %v811 = vsel %vm769, %v809, %v810
        %v812 = vrot.slane %v296, 5
        %v813 = vrot.slane %v812, 4
        %v814 = vrot.slane %v297, 5
        %v815 = vsel %vm769, %v813, %v814
        %v816 = vrot.slane %v814, 4
        %v817 = vrot.slane %v298, 5
        %v818 = vsel %vm769, %v816, %v817
        %v819 = vrot.slane %v299, 5
        %v820 = vrot.slane %v819, 4
        %v821 = vrot.slane %v300, 5
        %v822 = vsel %vm769, %v820, %v821
        %v823 = vrot.slane %v821, 4
        %v824 = vrot.slane %v301, 5
        %v825 = vsel %vm769, %v823, %v824
        %v826 = vrot.slane %v302, 5
        %v827 = vrot.slane %v826, 4
        %v828 = vrot.slane %v303, 5
        %v829 = vsel %vm769, %v827, %v828
        %v830 = vrot.slane %v828, 4
        %v831 = vrot.slane %v304, 5
        %v832 = vsel %vm769, %v830, %v831
        %v833 = vrot.slane %v305, 5
        %v834 = vrot.slane %v833, 4
        %v835 = vrot.slane %v306, 5
        %v836 = vsel %vm769, %v834, %v835
        %v837 = vrot.slane %v835, 4
        %v838 = vrot.slane %v307, 5
        %v839 = vsel %vm769, %v837, %v838
        %v840 = vrot.slane %v308, 5
        %v841 = vrot.slane %v840, 4
        %v842 = vrot.slane %v309, 5
        %v843 = vsel %vm769, %v841, %v842
        %v844 = vrot.slane %v842, 4
        %v845 = vrot.slane %v310, 5
        %v846 = vsel %vm769, %v844, %v845
        %v847 = vrot.slane %v311, 5
        %v848 = vrot.slane %v847, 4
        %v849 = vrot.slane %v312, 5
        %v850 = vsel %vm769, %v848, %v849
        %v851 = vrot.slane %v849, 4
        %v852 = vrot.slane %v313, 5
        %v853 = vsel %vm769, %v851, %v852
        %v854 = vrot.slane %v314, 5
        %v855 = vrot.slane %v854, 4
        %v856 = vrot.slane %v315, 5
        %v857 = vsel %vm769, %v855, %v856
        %v858 = vrot.slane %v856, 4
        %v859 = vrot.slane %v316, 5
        %v860 = vsel %vm769, %v858, %v859
        %v861 = vrot.slane %v317, 5
        %v862 = vrot.slane %v861, 4
        %v863 = vrot.slane %v318, 5
        %v864 = vsel %vm769, %v862, %v863
        %v865 = vrot.slane %v863, 4
        %v866 = vrot.slane %v319, 5
        %v867 = vsel %vm769, %v865, %v866
        %v868 = vrot.slane %v320, 5
        %v869 = vrot.slane %v868, 4
        %v870 = vrot.slane %v321, 5
        %v871 = vsel %vm769, %v869, %v870
        %v872 = vrot.slane %v870, 4
        %v873 = vrot.slane %v322, 5
        %v874 = vsel %vm769, %v872, %v873
        %v875 = vrot.slane %v323, 5
        %v876 = vrot.slane %v875, 4
        %v877 = vrot.slane %v324, 5
        %v878 = vsel %vm769, %v876, %v877
        %v879 = vrot.slane %v877, 4
        %v880 = vrot.slane %v325, 5
        %v881 = vsel %vm769, %v879, %v880
        %v883 = vshrl.u32 %v326, 16
        %v885 = vrot.slane %v883, 4
        %v886 = vshll.u32 %v326, 16
        %v888 = vrot.slane %v886, 5
        %v889 = vor.u32 %v885, %v888
        %v890 = vrot.slane %v889, 4
        %v892 = vshll.u32 %v327, 16
        %v894 = vrot.slane %v892, 5
        %v895 = vsel %vm334, %v890, %v894
        %v896 = vshrl.u32 %v327, 16
        %v898 = vrot.slane %v896, 4
        %v899 = vor.u32 %v898, %v894
        %v900 = vrot.slane %v899, 4
        %v902 = vshll.u32 %v328, 16
        %v904 = vrot.slane %v902, 5
        %v905 = vsel %vm334, %v900, %v904
        %v909 = vrot.slane %v326, 5
        %v910 = vrot.slane %v909, 4
        %v911 = vrot.slane %v327, 5
        %v912 = vsel %vm769, %v910, %v911
        %v913 = vrot.slane %v911, 4
        %v914 = vrot.slane %v328, 5
        %v915 = vsel %vm769, %v913, %v914
        %v917 = vshrl.u32 %v329, 16
        %v919 = vrot.slane %v917, 4
        %v920 = vshll.u32 %v329, 16
        %v922 = vrot.slane %v920, 5
        %v923 = vor.u32 %v919, %v922
        %v924 = vrot.slane %v923, 4
        %v926 = vshll.u32 %v330, 16
        %v928 = vrot.slane %v926, 5
        %v929 = vsel %vm334, %v924, %v928
        %v930 = vshrl.u32 %v330, 16
        %v932 = vrot.slane %v930, 4
        %v933 = vor.u32 %v932, %v928
        %v934 = vrot.slane %v933, 4
        %v936 = vshll.u32 %v331, 16
        %v938 = vrot.slane %v936, 5
        %v939 = vsel %vm334, %v934, %v938
        %v943 = vrot.slane %v329, 5
        %v944 = vrot.slane %v943, 4
        %v945 = vrot.slane %v330, 5
        %v946 = vsel %vm769, %v944, %v945
        %v947 = vrot.slane %v945, 4
        %v948 = vrot.slane %v331, 5
        %v949 = vsel %vm769, %v947, %v948
        %v950 = vunpack.c.l.b16 %v278
        %v951 = vunpack.c.l.b16 %v279
        %v952 = vunpack.c.l.b16 %v281
        %v953 = vunpack.c.l.b16 %v282
        %v954 = vunpack.c.l.b16 %v284
        %v955 = vunpack.c.l.b16 %v285
        %v956 = vunpack.c.l.b16 %v287
        %v957 = vunpack.c.l.b16 %v288
        %v958 = vunpack.c.l.b16 %v290
        %v959 = vunpack.c.l.b16 %v291
        %v960 = vunpack.c.l.b16 %v293
        %v961 = vunpack.c.l.b16 %v294
        %v962 = vunpack.c.l.b16 %v296
        %v963 = vunpack.c.l.b16 %v297
        %v964 = vunpack.c.l.b16 %v299
        %v965 = vunpack.c.l.b16 %v300
        %v966 = vunpack.c.l.b16 %v302
        %v967 = vunpack.c.l.b16 %v303
        %v968 = vunpack.c.l.b16 %v305
        %v969 = vunpack.c.l.b16 %v306
        %v970 = vunpack.c.l.b16 %v308
        %v971 = vunpack.c.l.b16 %v309
        %v972 = vunpack.c.l.b16 %v311
        %v973 = vunpack.c.l.b16 %v312
        %v974 = vunpack.c.l.b16 %v314
        %v975 = vunpack.c.l.b16 %v315
        %v976 = vunpack.c.l.b16 %v317
        %v977 = vunpack.c.l.b16 %v318
        %v978 = vunpack.c.l.b16 %v320
        %v979 = vunpack.c.l.b16 %v321
        %v980 = vunpack.c.l.b16 %v323
        %v981 = vunpack.c.l.b16 %v324
        %v982 = vpack.c.b16 %v951, %v950
        %v983 = vpack.c.b16 %v953, %v952
        %v984 = vpack.c.b16 %v955, %v954
        %v985 = vpack.c.b16 %v957, %v956
        %v986 = vpack.c.b16 %v959, %v958
        %v987 = vpack.c.b16 %v961, %v960
        %v988 = vpack.c.b16 %v963, %v962
        %v989 = vpack.c.b16 %v965, %v964
        %v990 = vpack.c.b16 %v967, %v966
        %v991 = vpack.c.b16 %v969, %v968
        %v992 = vpack.c.b16 %v971, %v970
        %v993 = vpack.c.b16 %v973, %v972
        %v994 = vpack.c.b16 %v975, %v974
        %v995 = vpack.c.b16 %v977, %v976
        %v996 = vpack.c.b16 %v979, %v978
        %v997 = vpack.c.b16 %v981, %v980
        %v998 = vunpack.c.l.b16 %v348
        %v999 = vunpack.c.l.b16 %v358
        %v1000 = vunpack.c.l.b16 %v372
        %v1001 = vunpack.c.l.b16 %v382
        %v1002 = vunpack.c.l.b16 %v396
        %v1003 = vunpack.c.l.b16 %v406
        %v1004 = vunpack.c.l.b16 %v420
        %v1005 = vunpack.c.l.b16 %v430
        %v1006 = vunpack.c.l.b16 %v444
        %v1007 = vunpack.c.l.b16 %v454
        %v1008 = vunpack.c.l.b16 %v468
        %v1009 = vunpack.c.l.b16 %v478
        %v1010 = vunpack.c.l.b16 %v492
        %v1011 = vunpack.c.l.b16 %v502
        %v1012 = vunpack.c.l.b16 %v516
        %v1013 = vunpack.c.l.b16 %v526
        %v1014 = vunpack.c.l.b16 %v540
        %v1015 = vunpack.c.l.b16 %v550
        %v1016 = vunpack.c.l.b16 %v564
        %v1017 = vunpack.c.l.b16 %v574
        %v1018 = vunpack.c.l.b16 %v588
        %v1019 = vunpack.c.l.b16 %v598
        %v1020 = vunpack.c.l.b16 %v612
        %v1021 = vunpack.c.l.b16 %v622
        %v1022 = vunpack.c.l.b16 %v636
        %v1023 = vunpack.c.l.b16 %v646
        %v1024 = vunpack.c.l.b16 %v660
        %v1025 = vunpack.c.l.b16 %v670
        %v1026 = vunpack.c.l.b16 %v684
        %v1027 = vunpack.c.l.b16 %v694
        %v1028 = vunpack.c.l.b16 %v708
        %v1029 = vunpack.c.l.b16 %v718
        %v1030 = vpack.c.b16 %v999, %v998
        %v1031 = vpack.c.b16 %v1001, %v1000
        %v1032 = vpack.c.b16 %v1003, %v1002
        %v1033 = vpack.c.b16 %v1005, %v1004
        %v1034 = vpack.c.b16 %v1007, %v1006
        %v1035 = vpack.c.b16 %v1009, %v1008
        %v1036 = vpack.c.b16 %v1011, %v1010
        %v1037 = vpack.c.b16 %v1013, %v1012
        %v1038 = vpack.c.b16 %v1015, %v1014
        %v1039 = vpack.c.b16 %v1017, %v1016
        %v1040 = vpack.c.b16 %v1019, %v1018
        %v1041 = vpack.c.b16 %v1021, %v1020
        %v1042 = vpack.c.b16 %v1023, %v1022
        %v1043 = vpack.c.b16 %v1025, %v1024
        %v1044 = vpack.c.b16 %v1027, %v1026
        %v1045 = vpack.c.b16 %v1029, %v1028
        %1046 = vrot.lane.b32.xlu0 %v1030, 16
        %v1047 = vpop.permute.xlu0 %1046
        %1048 = vrot.lane.b32.xlu0 %v1031, 16
        %v1049 = vpop.permute.xlu0 %1048
        %1050 = vrot.lane.b32.xlu0 %v1032, 16
        %v1051 = vpop.permute.xlu0 %1050
        %1052 = vrot.lane.b32.xlu0 %v1033, 16
        %v1053 = vpop.permute.xlu0 %1052
        %1054 = vrot.lane.b32.xlu0 %v1034, 16
        %v1055 = vpop.permute.xlu0 %1054
        %1056 = vrot.lane.b32.xlu0 %v1035, 16
        %v1057 = vpop.permute.xlu0 %1056
        %1058 = vrot.lane.b32.xlu0 %v1036, 16
        %v1059 = vpop.permute.xlu0 %1058
        %1060 = vrot.lane.b32.xlu0 %v1037, 16
        %v1061 = vpop.permute.xlu0 %1060
        %1062 = vrot.lane.b32.xlu0 %v1038, 16
        %v1063 = vpop.permute.xlu0 %1062
        %1064 = vrot.lane.b32.xlu0 %v1039, 16
        %v1065 = vpop.permute.xlu0 %1064
        %1066 = vrot.lane.b32.xlu0 %v1040, 16
        %v1067 = vpop.permute.xlu0 %1066
        %1068 = vrot.lane.b32.xlu0 %v1041, 16
        %v1069 = vpop.permute.xlu0 %1068
        %1070 = vrot.lane.b32.xlu0 %v1042, 16
        %v1071 = vpop.permute.xlu0 %1070
        %1072 = vrot.lane.b32.xlu0 %v1043, 16
        %v1073 = vpop.permute.xlu0 %1072
        %1074 = vrot.lane.b32.xlu0 %v1044, 16
        %v1075 = vpop.permute.xlu0 %1074
        %1076 = vrot.lane.b32.xlu0 %v1045, 16
        %v1077 = vpop.permute.xlu0 %1076
        %v1078 = vunpack.c.l.b16 %v773
        %v1079 = vunpack.c.l.b16 %v776
        %v1080 = vunpack.c.l.b16 %v780
        %v1081 = vunpack.c.l.b16 %v783
        %v1082 = vunpack.c.l.b16 %v787
        %v1083 = vunpack.c.l.b16 %v790
        %v1084 = vunpack.c.l.b16 %v794
        %v1085 = vunpack.c.l.b16 %v797
        %v1086 = vunpack.c.l.b16 %v801
        %v1087 = vunpack.c.l.b16 %v804
        %v1088 = vunpack.c.l.b16 %v808
        %v1089 = vunpack.c.l.b16 %v811
        %v1090 = vunpack.c.l.b16 %v815
        %v1091 = vunpack.c.l.b16 %v818
        %v1092 = vunpack.c.l.b16 %v822
        %v1093 = vunpack.c.l.b16 %v825
        %v1094 = vunpack.c.l.b16 %v829
        %v1095 = vunpack.c.l.b16 %v832
        %v1096 = vunpack.c.l.b16 %v836
        %v1097 = vunpack.c.l.b16 %v839
        %v1098 = vunpack.c.l.b16 %v843
        %v1099 = vunpack.c.l.b16 %v846
        %v1100 = vunpack.c.l.b16 %v850
        %v1101 = vunpack.c.l.b16 %v853
        %v1102 = vunpack.c.l.b16 %v857
        %v1103 = vunpack.c.l.b16 %v860
        %v1104 = vunpack.c.l.b16 %v864
        %v1105 = vunpack.c.l.b16 %v867
        %v1106 = vunpack.c.l.b16 %v871
        %v1107 = vunpack.c.l.b16 %v874
        %v1108 = vunpack.c.l.b16 %v878
        %v1109 = vunpack.c.l.b16 %v881
        %v1110 = vpack.c.b16 %v1079, %v1078
        %v1111 = vpack.c.b16 %v1081, %v1080
        %v1112 = vpack.c.b16 %v1083, %v1082
        %v1113 = vpack.c.b16 %v1085, %v1084
        %v1114 = vpack.c.b16 %v1087, %v1086
        %v1115 = vpack.c.b16 %v1089, %v1088
        %v1116 = vpack.c.b16 %v1091, %v1090
        %v1117 = vpack.c.b16 %v1093, %v1092
        %v1118 = vpack.c.b16 %v1095, %v1094
        %v1119 = vpack.c.b16 %v1097, %v1096
        %v1120 = vpack.c.b16 %v1099, %v1098
        %v1121 = vpack.c.b16 %v1101, %v1100
        %v1122 = vpack.c.b16 %v1103, %v1102
        %v1123 = vpack.c.b16 %v1105, %v1104
        %v1124 = vpack.c.b16 %v1107, %v1106
        %v1125 = vpack.c.b16 %v1109, %v1108
        %1126 = vrot.lane.b32.xlu0 %v1110, 32
        %v1127 = vpop.permute.xlu0 %1126
        %1128 = vrot.lane.b32.xlu0 %v1111, 32
        %v1129 = vpop.permute.xlu0 %1128
        %1130 = vrot.lane.b32.xlu0 %v1112, 32
        %v1131 = vpop.permute.xlu0 %1130
        %1132 = vrot.lane.b32.xlu0 %v1113, 32
        %v1133 = vpop.permute.xlu0 %1132
        %1134 = vrot.lane.b32.xlu0 %v1114, 32
        %v1135 = vpop.permute.xlu0 %1134
        %1136 = vrot.lane.b32.xlu0 %v1115, 32
        %v1137 = vpop.permute.xlu0 %1136
        %1138 = vrot.lane.b32.xlu0 %v1116, 32
        %v1139 = vpop.permute.xlu0 %1138
        %1140 = vrot.lane.b32.xlu0 %v1117, 32
        %v1141 = vpop.permute.xlu0 %1140
        %1142 = vrot.lane.b32.xlu0 %v1118, 32
        %v1143 = vpop.permute.xlu0 %1142
        %1144 = vrot.lane.b32.xlu0 %v1119, 32
        %v1145 = vpop.permute.xlu0 %1144
        %1146 = vrot.lane.b32.xlu0 %v1120, 32
        %v1147 = vpop.permute.xlu0 %1146
        %1148 = vrot.lane.b32.xlu0 %v1121, 32
        %v1149 = vpop.permute.xlu0 %1148
        %1150 = vrot.lane.b32.xlu0 %v1122, 32
        %v1151 = vpop.permute.xlu0 %1150
        %1152 = vrot.lane.b32.xlu0 %v1123, 32
        %v1153 = vpop.permute.xlu0 %1152
        %1154 = vrot.lane.b32.xlu0 %v1124, 32
        %v1155 = vpop.permute.xlu0 %1154
        %1156 = vrot.lane.b32.xlu0 %v1125, 32
        %v1157 = vpop.permute.xlu0 %1156
        %v1158 = vunpack.c.l.b16 %v326
        %v1159 = vunpack.c.l.b16 %v327
        %v1160 = vpack.c.b16 %v1159, %v1158
        %1161 = vrot.lane.b32.xlu0 %v983, 48
        %v1162 = vpop.permute.xlu0 %1161
        %1163 = vrot.lane.b32.xlu0 %v984, 48
        %v1164 = vpop.permute.xlu0 %1163
        %1165 = vrot.lane.b32.xlu0 %v985, 48
        %v1166 = vpop.permute.xlu0 %1165
        %1167 = vrot.lane.b32.xlu0 %v986, 48
        %v1168 = vpop.permute.xlu0 %1167
        %1169 = vrot.lane.b32.xlu0 %v987, 48
        %v1170 = vpop.permute.xlu0 %1169
        %1171 = vrot.lane.b32.xlu0 %v988, 48
        %v1172 = vpop.permute.xlu0 %1171
        %1173 = vrot.lane.b32.xlu0 %v989, 48
        %v1174 = vpop.permute.xlu0 %1173
        %1175 = vrot.lane.b32.xlu0 %v990, 48
        %v1176 = vpop.permute.xlu0 %1175
        %1177 = vrot.lane.b32.xlu0 %v991, 48
        %v1178 = vpop.permute.xlu0 %1177
        %1179 = vrot.lane.b32.xlu0 %v992, 48
        %v1180 = vpop.permute.xlu0 %1179
        %1181 = vrot.lane.b32.xlu0 %v993, 48
        %v1182 = vpop.permute.xlu0 %1181
        %1183 = vrot.lane.b32.xlu0 %v994, 48
        %v1184 = vpop.permute.xlu0 %1183
        %1185 = vrot.lane.b32.xlu0 %v995, 48
        %v1186 = vpop.permute.xlu0 %1185
        %1187 = vrot.lane.b32.xlu0 %v996, 48
        %v1188 = vpop.permute.xlu0 %1187
        %1189 = vrot.lane.b32.xlu0 %v997, 48
        %v1190 = vpop.permute.xlu0 %1189
        %1191 = vrot.lane.b32.xlu0 %v1160, 48
        %v1192 = vpop.permute.xlu0 %1191
        %v1193 = vunpack.c.l.b16 %v895
        %v1194 = vunpack.c.l.b16 %v905
        %v1195 = vpack.c.b16 %v1194, %v1193
        %1196 = vrot.lane.b32.xlu0 %v1031, 64
        %v1197 = vpop.permute.xlu0 %1196
        %1198 = vrot.lane.b32.xlu0 %v1032, 64
        %v1199 = vpop.permute.xlu0 %1198
        %1200 = vrot.lane.b32.xlu0 %v1033, 64
        %v1201 = vpop.permute.xlu0 %1200
        %1202 = vrot.lane.b32.xlu0 %v1034, 64
        %v1203 = vpop.permute.xlu0 %1202
        %1204 = vrot.lane.b32.xlu0 %v1035, 64
        %v1205 = vpop.permute.xlu0 %1204
        %1206 = vrot.lane.b32.xlu0 %v1036, 64
        %v1207 = vpop.permute.xlu0 %1206
        %1208 = vrot.lane.b32.xlu0 %v1037, 64
        %v1209 = vpop.permute.xlu0 %1208
        %1210 = vrot.lane.b32.xlu0 %v1038, 64
        %v1211 = vpop.permute.xlu0 %1210
        %1212 = vrot.lane.b32.xlu0 %v1039, 64
        %v1213 = vpop.permute.xlu0 %1212
        %1214 = vrot.lane.b32.xlu0 %v1040, 64
        %v1215 = vpop.permute.xlu0 %1214
        %1216 = vrot.lane.b32.xlu0 %v1041, 64
        %v1217 = vpop.permute.xlu0 %1216
        %1218 = vrot.lane.b32.xlu0 %v1042, 64
        %v1219 = vpop.permute.xlu0 %1218
        %1220 = vrot.lane.b32.xlu0 %v1043, 64
        %v1221 = vpop.permute.xlu0 %1220
        %1222 = vrot.lane.b32.xlu0 %v1044, 64
        %v1223 = vpop.permute.xlu0 %1222
        %1224 = vrot.lane.b32.xlu0 %v1045, 64
        %v1225 = vpop.permute.xlu0 %1224
        %1226 = vrot.lane.b32.xlu0 %v1195, 64
        %v1227 = vpop.permute.xlu0 %1226
        %v1228 = vunpack.c.l.b16 %v912
        %v1229 = vunpack.c.l.b16 %v915
        %v1230 = vpack.c.b16 %v1229, %v1228
        %1231 = vrot.lane.b32.xlu0 %v1111, 80
        %v1232 = vpop.permute.xlu0 %1231
        %1233 = vrot.lane.b32.xlu0 %v1112, 80
        %v1234 = vpop.permute.xlu0 %1233
        %1235 = vrot.lane.b32.xlu0 %v1113, 80
        %v1236 = vpop.permute.xlu0 %1235
        %1237 = vrot.lane.b32.xlu0 %v1114, 80
        %v1238 = vpop.permute.xlu0 %1237
        %1239 = vrot.lane.b32.xlu0 %v1115, 80
        %v1240 = vpop.permute.xlu0 %1239
        %1241 = vrot.lane.b32.xlu0 %v1116, 80
        %v1242 = vpop.permute.xlu0 %1241
        %1243 = vrot.lane.b32.xlu0 %v1117, 80
        %v1244 = vpop.permute.xlu0 %1243
        %1245 = vrot.lane.b32.xlu0 %v1118, 80
        %v1246 = vpop.permute.xlu0 %1245
        %1247 = vrot.lane.b32.xlu0 %v1119, 80
        %v1248 = vpop.permute.xlu0 %1247
        %1249 = vrot.lane.b32.xlu0 %v1120, 80
        %v1250 = vpop.permute.xlu0 %1249
        %1251 = vrot.lane.b32.xlu0 %v1121, 80
        %v1252 = vpop.permute.xlu0 %1251
        %1253 = vrot.lane.b32.xlu0 %v1122, 80
        %v1254 = vpop.permute.xlu0 %1253
        %1255 = vrot.lane.b32.xlu0 %v1123, 80
        %v1256 = vpop.permute.xlu0 %1255
        %1257 = vrot.lane.b32.xlu0 %v1124, 80
        %v1258 = vpop.permute.xlu0 %1257
        %1259 = vrot.lane.b32.xlu0 %v1125, 80
        %v1260 = vpop.permute.xlu0 %1259
        %1261 = vrot.lane.b32.xlu0 %v1230, 80
        %v1262 = vpop.permute.xlu0 %1261
        %v1263 = vunpack.c.l.b16 %v329
        %v1264 = vunpack.c.l.b16 %v330
        %v1265 = vpack.c.b16 %v1264, %v1263
        %1266 = vrot.lane.b32.xlu0 %v984, 96
        %v1267 = vpop.permute.xlu0 %1266
        %1268 = vrot.lane.b32.xlu0 %v985, 96
        %v1269 = vpop.permute.xlu0 %1268
        %1270 = vrot.lane.b32.xlu0 %v986, 96
        %v1271 = vpop.permute.xlu0 %1270
        %1272 = vrot.lane.b32.xlu0 %v987, 96
        %v1273 = vpop.permute.xlu0 %1272
        %1274 = vrot.lane.b32.xlu0 %v988, 96
        %v1275 = vpop.permute.xlu0 %1274
        %1276 = vrot.lane.b32.xlu0 %v989, 96
        %v1277 = vpop.permute.xlu0 %1276
        %1278 = vrot.lane.b32.xlu0 %v990, 96
        %v1279 = vpop.permute.xlu0 %1278
        %1280 = vrot.lane.b32.xlu0 %v991, 96
        %v1281 = vpop.permute.xlu0 %1280
        %1282 = vrot.lane.b32.xlu0 %v992, 96
        %v1283 = vpop.permute.xlu0 %1282
        %1284 = vrot.lane.b32.xlu0 %v993, 96
        %v1285 = vpop.permute.xlu0 %1284
        %1286 = vrot.lane.b32.xlu0 %v994, 96
        %v1287 = vpop.permute.xlu0 %1286
        %1288 = vrot.lane.b32.xlu0 %v995, 96
        %v1289 = vpop.permute.xlu0 %1288
        %1290 = vrot.lane.b32.xlu0 %v996, 96
        %v1291 = vpop.permute.xlu0 %1290
        %1292 = vrot.lane.b32.xlu0 %v997, 96
        %v1293 = vpop.permute.xlu0 %1292
        %1294 = vrot.lane.b32.xlu0 %v1160, 96
        %v1295 = vpop.permute.xlu0 %1294
        %1296 = vrot.lane.b32.xlu0 %v1265, 96
        %v1297 = vpop.permute.xlu0 %1296
        %v1298 = vunpack.c.l.b16 %v929
        %v1299 = vunpack.c.l.b16 %v939
        %v1300 = vpack.c.b16 %v1299, %v1298
        %1301 = vrot.lane.b32.xlu0 %v1032, 112
        %v1302 = vpop.permute.xlu0 %1301
        %1303 = vrot.lane.b32.xlu0 %v1033, 112
        %v1304 = vpop.permute.xlu0 %1303
        %1305 = vrot.lane.b32.xlu0 %v1034, 112
        %v1306 = vpop.permute.xlu0 %1305
        %1307 = vrot.lane.b32.xlu0 %v1035, 112
        %v1308 = vpop.permute.xlu0 %1307
        %1309 = vrot.lane.b32.xlu0 %v1036, 112
        %v1310 = vpop.permute.xlu0 %1309
        %1311 = vrot.lane.b32.xlu0 %v1037, 112
        %v1312 = vpop.permute.xlu0 %1311
        %1313 = vrot.lane.b32.xlu0 %v1038, 112
        %v1314 = vpop.permute.xlu0 %1313
        %1315 = vrot.lane.b32.xlu0 %v1039, 112
        %v1316 = vpop.permute.xlu0 %1315
        %1317 = vrot.lane.b32.xlu0 %v1040, 112
        %v1318 = vpop.permute.xlu0 %1317
        %1319 = vrot.lane.b32.xlu0 %v1041, 112
        %v1320 = vpop.permute.xlu0 %1319
        %1321 = vrot.lane.b32.xlu0 %v1042, 112
        %v1322 = vpop.permute.xlu0 %1321
        %1323 = vrot.lane.b32.xlu0 %v1043, 112
        %v1324 = vpop.permute.xlu0 %1323
        %1325 = vrot.lane.b32.xlu0 %v1044, 112
        %v1326 = vpop.permute.xlu0 %1325
        %1327 = vrot.lane.b32.xlu0 %v1045, 112
        %v1328 = vpop.permute.xlu0 %1327
        %1329 = vrot.lane.b32.xlu0 %v1195, 112
        %v1330 = vpop.permute.xlu0 %1329
        %1331 = vrot.lane.b32.xlu0 %v1300, 112
        %v1332 = vpop.permute.xlu0 %1331
        %v1333 = vunpack.c.l.b16 %v946
        %v1334 = vunpack.c.l.b16 %v949
        %v1335 = vpack.c.b16 %v1334, %v1333
        %vm1336 = vcmask 130048
        %v1339 = vsel %vm1336, %v982, %v1047
        %v1342 = vsel %vm1336, %v983, %v1049
        %v1345 = vsel %vm1336, %v984, %v1051
        %v1348 = vsel %vm1336, %v985, %v1053
        %v1351 = vsel %vm1336, %v986, %v1055
        %v1354 = vsel %vm1336, %v987, %v1057
        %v1357 = vsel %vm1336, %v988, %v1059
        %v1360 = vsel %vm1336, %v989, %v1061
        %v1363 = vsel %vm1336, %v990, %v1063
        %v1366 = vsel %vm1336, %v991, %v1065
        %v1369 = vsel %vm1336, %v992, %v1067
        %v1372 = vsel %vm1336, %v993, %v1069
        %v1375 = vsel %vm1336, %v994, %v1071
        %v1378 = vsel %vm1336, %v995, %v1073
        %v1381 = vsel %vm1336, %v996, %v1075
        %v1384 = vsel %vm1336, %v997, %v1077
        %vm1385 = vcmask 261120
        %v1387 = vsel %vm1385, %v1339, %v1127
        %v1389 = vsel %vm1385, %v1342, %v1129
        %v1391 = vsel %vm1385, %v1345, %v1131
        %v1393 = vsel %vm1385, %v1348, %v1133
        %v1395 = vsel %vm1385, %v1351, %v1135
        %v1397 = vsel %vm1385, %v1354, %v1137
        %v1399 = vsel %vm1385, %v1357, %v1139
        %v1401 = vsel %vm1385, %v1360, %v1141
        %v1403 = vsel %vm1385, %v1363, %v1143
        %v1405 = vsel %vm1385, %v1366, %v1145
        %v1407 = vsel %vm1385, %v1369, %v1147
        %v1409 = vsel %vm1385, %v1372, %v1149
        %v1411 = vsel %vm1385, %v1375, %v1151
        %v1413 = vsel %vm1385, %v1378, %v1153
        %v1415 = vsel %vm1385, %v1381, %v1155
        %v1417 = vsel %vm1385, %v1384, %v1157
        %vm1418 = vcmask 392192
        %v1420 = vsel %vm1418, %v1387, %v1162
        %v1422 = vsel %vm1418, %v1389, %v1164
        %v1424 = vsel %vm1418, %v1391, %v1166
        %v1426 = vsel %vm1418, %v1393, %v1168
        %v1428 = vsel %vm1418, %v1395, %v1170
        %v1430 = vsel %vm1418, %v1397, %v1172
        %v1432 = vsel %vm1418, %v1399, %v1174
        %v1434 = vsel %vm1418, %v1401, %v1176
        %v1436 = vsel %vm1418, %v1403, %v1178
        %v1438 = vsel %vm1418, %v1405, %v1180
        %v1440 = vsel %vm1418, %v1407, %v1182
        %v1442 = vsel %vm1418, %v1409, %v1184
        %v1444 = vsel %vm1418, %v1411, %v1186
        %v1446 = vsel %vm1418, %v1413, %v1188
        %v1448 = vsel %vm1418, %v1415, %v1190
        %v1450 = vsel %vm1418, %v1417, %v1192
        %vm1451 = vcmask 523264
        %v1453 = vsel %vm1451, %v1420, %v1197
        %v1455 = vsel %vm1451, %v1422, %v1199
        %v1457 = vsel %vm1451, %v1424, %v1201
        %v1459 = vsel %vm1451, %v1426, %v1203
        %v1461 = vsel %vm1451, %v1428, %v1205
        %v1463 = vsel %vm1451, %v1430, %v1207
        %v1465 = vsel %vm1451, %v1432, %v1209
        %v1467 = vsel %vm1451, %v1434, %v1211
        %v1469 = vsel %vm1451, %v1436, %v1213
        %v1471 = vsel %vm1451, %v1438, %v1215
        %v1473 = vsel %vm1451, %v1440, %v1217
        %v1475 = vsel %vm1451, %v1442, %v1219
        %v1477 = vsel %vm1451, %v1444, %v1221
        %v1479 = vsel %vm1451, %v1446, %v1223
        %v1481 = vsel %vm1451, %v1448, %v1225
        %v1483 = vsel %vm1451, %v1450, %v1227
        %vm1484 = vcmask 654336
        %v1486 = vsel %vm1484, %v1453, %v1232
        %v1488 = vsel %vm1484, %v1455, %v1234
        %v1490 = vsel %vm1484, %v1457, %v1236
        %v1492 = vsel %vm1484, %v1459, %v1238
        %v1494 = vsel %vm1484, %v1461, %v1240
        %v1496 = vsel %vm1484, %v1463, %v1242
        %v1498 = vsel %vm1484, %v1465, %v1244
        %v1500 = vsel %vm1484, %v1467, %v1246
        %v1502 = vsel %vm1484, %v1469, %v1248
        %v1504 = vsel %vm1484, %v1471, %v1250
        %v1506 = vsel %vm1484, %v1473, %v1252
        %v1508 = vsel %vm1484, %v1475, %v1254
        %v1510 = vsel %vm1484, %v1477, %v1256
        %v1512 = vsel %vm1484, %v1479, %v1258
        %v1514 = vsel %vm1484, %v1481, %v1260
        %v1516 = vsel %vm1484, %v1483, %v1262
        %vm1517 = vcmask 785408
        %v1519 = vsel %vm1517, %v1486, %v1267
        %v1521 = vsel %vm1517, %v1488, %v1269
        %v1523 = vsel %vm1517, %v1490, %v1271
        %v1525 = vsel %vm1517, %v1492, %v1273
        %v1527 = vsel %vm1517, %v1494, %v1275
        %v1529 = vsel %vm1517, %v1496, %v1277
        %v1531 = vsel %vm1517, %v1498, %v1279
        %v1533 = vsel %vm1517, %v1500, %v1281
        %v1535 = vsel %vm1517, %v1502, %v1283
        %v1537 = vsel %vm1517, %v1504, %v1285
        %v1539 = vsel %vm1517, %v1506, %v1287
        %v1541 = vsel %vm1517, %v1508, %v1289
        %v1543 = vsel %vm1517, %v1510, %v1291
        %v1545 = vsel %vm1517, %v1512, %v1293
        %v1547 = vsel %vm1517, %v1514, %v1295
        %v1549 = vsel %vm1517, %v1516, %v1297
        %vm1550 = vcmask 916480
        %v1552 = vsel %vm1550, %v1519, %v1302
        %v1555 = vsel %vm1550, %v1521, %v1304
        %v1558 = vsel %vm1550, %v1523, %v1306
        %v1561 = vsel %vm1550, %v1525, %v1308
        %v1564 = vsel %vm1550, %v1527, %v1310
        %v1567 = vsel %vm1550, %v1529, %v1312
        %v1570 = vsel %vm1550, %v1531, %v1314
        %v1573 = vsel %vm1550, %v1533, %v1316
        %v1576 = vsel %vm1550, %v1535, %v1318
        %v1579 = vsel %vm1550, %v1537, %v1320
        %v1582 = vsel %vm1550, %v1539, %v1322
        %v1585 = vsel %vm1550, %v1541, %v1324
        %v1588 = vsel %vm1550, %v1543, %v1326
        %v1591 = vsel %vm1550, %v1545, %v1328
        %v1594 = vsel %vm1550, %v1547, %v1330
        %v1597 = vsel %vm1550, %v1549, %v1332
        %v1599 = vld [vmem:[%s1] sm:$0xf]
        %v1600 = vld [vmem:[%s1 + $0x4] sm:$0xf]
        %v1601 = vld [vmem:[%s1 + $0x8] sm:$0xf]
        %v1602 = vld [vmem:[%s1 + $0xc] sm:$0xf]
        %v1603 = vld [vmem:[%s1 + $0x10] sm:$0xf]
        %v1604 = vld [vmem:[%s1 + $0x14] sm:$0xf]
        %v1605 = vld [vmem:[%s1 + $0x18] sm:$0xf]
        %v1606 = vld [vmem:[%s1 + $0x1c] sm:$0xf]
        %v1607 = vld [vmem:[%s1 + $0x20] sm:$0xf]
        %v1608 = vld [vmem:[%s1 + $0x24] sm:$0xf]
        %v1609 = vld [vmem:[%s1 + $0x28] sm:$0xf]
        %v1610 = vld [vmem:[%s1 + $0x2c] sm:$0xf]
        %v1611 = vld [vmem:[%s1 + $0x30] sm:$0xf]
        %v1612 = vld [vmem:[%s1 + $0x34] sm:$0xf]
        %v1613 = vld [vmem:[%s1 + $0x38] sm:$0xf]
        %v1614 = vld [vmem:[%s1 + $0x3c] sm:$0xf]
        %v1615 = vld [vmem:[%s1 + $0x40] sm:$0xf]
        %v1616 = vld [vmem:[%s1 + $0x44] sm:$0xf]
        %v1635 = vunpack.c.l.b16 %v1599
        %v1636 = vunpack.c.l.b16 %v1600
        %v1637 = vunpack.c.l.b16 %v1601
        %v1638 = vunpack.c.l.b16 %v1602
        %v1639 = vunpack.c.l.b16 %v1603
        %v1640 = vunpack.c.l.b16 %v1604
        %v1641 = vunpack.c.l.b16 %v1605
        %v1642 = vunpack.c.l.b16 %v1606
        %v1643 = vunpack.c.l.b16 %v1607
        %v1644 = vunpack.c.l.b16 %v1608
        %v1645 = vunpack.c.l.b16 %v1609
        %v1646 = vunpack.c.l.b16 %v1610
        %v1647 = vunpack.c.l.b16 %v1611
        %v1648 = vunpack.c.l.b16 %v1612
        %v1649 = vunpack.c.l.b16 %v1613
        %v1650 = vunpack.c.l.b16 %v1614
        %v1651 = vunpack.c.l.b16 %v1615
        %v1652 = vunpack.c.l.b16 %v1616
        %v1653 = vpack.c.b16 %v1636, %v1635
        %v1654 = vpack.c.b16 %v1638, %v1637
        %v1655 = vpack.c.b16 %v1640, %v1639
        %v1656 = vpack.c.b16 %v1642, %v1641
        %v1657 = vpack.c.b16 %v1644, %v1643
        %v1658 = vpack.c.b16 %v1646, %v1645
        %v1659 = vpack.c.b16 %v1648, %v1647
        %v1660 = vpack.c.b16 %v1650, %v1649
        %v1661 = vpack.c.b16 %v1652, %v1651
        %v1672 = vsel %vm1336, %v1112, 0
        %v1675 = vsel %vm1336, %v1113, 0
        %v1678 = vsel %vm1336, %v1114, 0
        %v1681 = vsel %vm1336, %v1115, 0
        %v1684 = vsel %vm1336, %v1116, 0
        %v1687 = vsel %vm1336, %v1117, 0
        %v1690 = vsel %vm1336, %v1118, 0
        %v1693 = vsel %vm1336, %v1119, 0
        %v1696 = vsel %vm1336, %v1120, 0
        %v1699 = vsel %vm1336, %v1121, 0
        %v1702 = vsel %vm1336, %v1122, 0
        %v1705 = vsel %vm1336, %v1123, 0
        %v1708 = vsel %vm1336, %v1124, 0
        %v1711 = vsel %vm1336, %v1125, 0
        %v1714 = vsel %vm1336, %v1230, 0
        %v1717 = vsel %vm1336, %v1335, 0
        %1719 = vmatprep.subr.bf16.mxu0 0
        %1720 = vmatpush1.bf16.msra.mxu0 %v1653
        %1721 = vmatprep.subr.bf16.mxu0 0
        %1722 = vmatpush1.bf16.msra.mxu0 %v1654
        %1723 = vmatprep.subr.bf16.mxu0 0
        %1724 = vmatpush1.bf16.msra.mxu0 %v1655
        %1725 = vmatprep.subr.bf16.mxu0 0
        %1726 = vmatpush1.bf16.msra.mxu0 %v1656
        %1727 = vmatprep.subr.bf16.mxu0 0
        %1728 = vmatpush1.bf16.msra.mxu0 %v1657
        %1729 = vmatprep.subr.bf16.mxu0 0
        %1730 = vmatpush1.bf16.msra.mxu0 %v1658
        %1731 = vmatprep.subr.bf16.mxu0 0
        %1732 = vmatpush1.bf16.msra.mxu0 %v1659
        %1733 = vmatprep.subr.bf16.mxu0 0
        %1734 = vmatpush1.bf16.msra.mxu0 %v1660
        %1735 = vmatprep.subr.bf16.mxu0 0
        %1736 = vmatpush1.bf16.msra.mxu0 %v1661
        %1737 = vmatprep.subr.bf16.mxu0 0
        %1738 = vmatpush1.bf16.msra.mxu0 0
        %1739 = vmatprep.subr.bf16.mxu0 0
        %1740 = vmatpush1.bf16.msra.mxu0 0
        %1741 = vmatprep.subr.bf16.mxu0 0
        %1742 = vmatpush1.bf16.msra.mxu0 0
        %1743 = vmatprep.subr.bf16.mxu0 0
        %1744 = vmatpush1.bf16.msra.mxu0 0
        %1745 = vmatprep.subr.bf16.mxu0 0
        %1746 = vmatpush1.bf16.msra.mxu0 0
        %1747 = vmatprep.subr.bf16.mxu0 0
        %1748 = vmatpush1.bf16.msra.mxu0 0
        %1749 = vmatprep.subr.bf16.mxu0 0
        %1750 = vmatpush1.bf16.msra.mxu0 0
        %1751 = vmatprep.mubr.bf16.mxu0 %v1672
        %1752 = vmatmul.mubr.bf16.gmra.mrb[0].mxu0 %v1552
        %v1753 = vpop.f32.mrb[0].mxu0
        %v1754 = vadd.f32 0.0, %v1753
        %v1755 = vpop.f32.mrb[0].mxu0
        %v1756 = vpop.f32.mrb[0].mxu0
        %v1757 = vadd.f32 0.0, %v1756
        %v1758 = vpop.f32.mrb[0].mxu0
        %1759 = vmatprep.mubr.bf16.mxu0 %v1675
        %1760 = vmatmul.mubr.bf16.gmra.mrb[0].mxu0 %v1555
        %v1761 = vpop.f32.mrb[0].mxu0
        %v1762 = vadd.f32 0.0, %v1761
        %v1763 = vpop.f32.mrb[0].mxu0
        %v1764 = vpop.f32.mrb[0].mxu0
        %v1765 = vadd.f32 0.0, %v1764
        %v1766 = vpop.f32.mrb[0].mxu0
        %1767 = vmatprep.mubr.bf16.mxu0 %v1678
        %1768 = vmatmul.mubr.bf16.gmra.mrb[0].mxu0 %v1558
        %v1769 = vpop.f32.mrb[0].mxu0
        %v1770 = vadd.f32 0.0, %v1769
        %v1771 = vpop.f32.mrb[0].mxu0
        %v1772 = vpop.f32.mrb[0].mxu0
        %v1773 = vadd.f32 0.0, %v1772
        %v1774 = vpop.f32.mrb[0].mxu0
        %1775 = vmatprep.mubr.bf16.mxu0 %v1681
        %1776 = vmatmul.mubr.bf16.gmra.mrb[0].mxu0 %v1561
        %v1777 = vpop.f32.mrb[0].mxu0
        %v1778 = vadd.f32 0.0, %v1777
        %v1779 = vpop.f32.mrb[0].mxu0
        %v1780 = vpop.f32.mrb[0].mxu0
        %v1781 = vadd.f32 0.0, %v1780
        %v1782 = vpop.f32.mrb[0].mxu0
        %1783 = vmatprep.mubr.bf16.mxu0 %v1684
        %1784 = vmatmul.mubr.bf16.gmra.mrb[0].mxu0 %v1564
        %v1785 = vpop.f32.mrb[0].mxu0
        %v1786 = vadd.f32 0.0, %v1785
        %v1787 = vpop.f32.mrb[0].mxu0
        %v1788 = vpop.f32.mrb[0].mxu0
        %v1789 = vadd.f32 0.0, %v1788
        %v1790 = vpop.f32.mrb[0].mxu0
        %1791 = vmatprep.mubr.bf16.mxu0 %v1687
        %1792 = vmatmul.mubr.bf16.gmra.mrb[0].mxu0 %v1567
        %v1793 = vpop.f32.mrb[0].mxu0
        %v1794 = vadd.f32 0.0, %v1793
        %v1795 = vpop.f32.mrb[0].mxu0
        %v1796 = vpop.f32.mrb[0].mxu0
        %v1797 = vadd.f32 0.0, %v1796
        %v1798 = vpop.f32.mrb[0].mxu0
        %1799 = vmatprep.mubr.bf16.mxu0 %v1690
        %1800 = vmatmul.mubr.bf16.gmra.mrb[0].mxu0 %v1570
        %v1801 = vpop.f32.mrb[0].mxu0
        %v1802 = vadd.f32 0.0, %v1801
        %v1803 = vpop.f32.mrb[0].mxu0
        %v1804 = vpop.f32.mrb[0].mxu0
        %v1805 = vadd.f32 0.0, %v1804
        %v1806 = vpop.f32.mrb[0].mxu0
        %1807 = vmatprep.mubr.bf16.mxu0 %v1693
        %1808 = vmatmul.mubr.bf16.gmra.mrb[0].mxu0 %v1573
        %v1809 = vpop.f32.mrb[0].mxu0
        %v1810 = vadd.f32 0.0, %v1809
        %v1811 = vpop.f32.mrb[0].mxu0
        %v1812 = vpop.f32.mrb[0].mxu0
        %v1813 = vadd.f32 0.0, %v1812
        %v1814 = vpop.f32.mrb[0].mxu0
        %1815 = vmatprep.mubr.bf16.mxu0 %v1696
        %1816 = vmatmul.mubr.bf16.gmra.mrb[0].mxu0 %v1576
        %v1817 = vpop.f32.mrb[0].mxu0
        %v1818 = vadd.f32 0.0, %v1817
        %v1819 = vpop.f32.mrb[0].mxu0
        %v1820 = vpop.f32.mrb[0].mxu0
        %v1821 = vadd.f32 0.0, %v1820
        %v1822 = vpop.f32.mrb[0].mxu0
        %1823 = vmatprep.mubr.bf16.mxu0 %v1699
        %1824 = vmatmul.mubr.bf16.gmra.mrb[0].mxu0 %v1579
        %v1825 = vpop.f32.mrb[0].mxu0
        %v1826 = vadd.f32 0.0, %v1825
        %v1827 = vpop.f32.mrb[0].mxu0
        %v1828 = vpop.f32.mrb[0].mxu0
        %v1829 = vadd.f32 0.0, %v1828
        %v1830 = vpop.f32.mrb[0].mxu0
        %1831 = vmatprep.mubr.bf16.mxu0 %v1702
        %1832 = vmatmul.mubr.bf16.gmra.mrb[0].mxu0 %v1582
        %v1833 = vpop.f32.mrb[0].mxu0
        %v1834 = vadd.f32 0.0, %v1833
        %v1835 = vpop.f32.mrb[0].mxu0
        %v1836 = vpop.f32.mrb[0].mxu0
        %v1837 = vadd.f32 0.0, %v1836
        %v1838 = vpop.f32.mrb[0].mxu0
        %1839 = vmatprep.mubr.bf16.mxu0 %v1705
        %1840 = vmatmul.mubr.bf16.gmra.mrb[0].mxu0 %v1585
        %v1841 = vpop.f32.mrb[0].mxu0
        %v1842 = vadd.f32 0.0, %v1841
        %v1843 = vpop.f32.mrb[0].mxu0
        %v1844 = vpop.f32.mrb[0].mxu0
        %v1845 = vadd.f32 0.0, %v1844
        %v1846 = vpop.f32.mrb[0].mxu0
        %1847 = vmatprep.mubr.bf16.mxu0 %v1708
        %1848 = vmatmul.mubr.bf16.gmra.mrb[0].mxu0 %v1588
        %v1849 = vpop.f32.mrb[0].mxu0
        %v1850 = vadd.f32 0.0, %v1849
        %v1851 = vpop.f32.mrb[0].mxu0
        %v1852 = vpop.f32.mrb[0].mxu0
        %v1853 = vadd.f32 0.0, %v1852
        %v1854 = vpop.f32.mrb[0].mxu0
        %1855 = vmatprep.mubr.bf16.mxu0 %v1711
        %1856 = vmatmul.mubr.bf16.gmra.mrb[0].mxu0 %v1591
        %v1857 = vpop.f32.mrb[0].mxu0
        %v1858 = vadd.f32 0.0, %v1857
        %v1859 = vpop.f32.mrb[0].mxu0
        %v1860 = vpop.f32.mrb[0].mxu0
        %v1861 = vadd.f32 0.0, %v1860
        %v1862 = vpop.f32.mrb[0].mxu0
        %1863 = vmatprep.mubr.bf16.mxu0 %v1714
        %1864 = vmatmul.mubr.bf16.gmra.mrb[0].mxu0 %v1594
        %v1865 = vpop.f32.mrb[0].mxu0
        %v1866 = vadd.f32 0.0, %v1865
        %v1867 = vpop.f32.mrb[0].mxu0
        %v1868 = vpop.f32.mrb[0].mxu0
        %v1869 = vadd.f32 0.0, %v1868
        %v1870 = vpop.f32.mrb[0].mxu0
        %1871 = vmatprep.mubr.bf16.mxu0 %v1717
        %1872 = vmatmul.mubr.bf16.gmra.mrb[0].mxu0 %v1597
        %v1873 = vpop.f32.mrb[0].mxu0
        %v1874 = vadd.f32 0.0, %v1873
        %v1875 = vpop.f32.mrb[0].mxu0
        %v1876 = vpop.f32.mrb[0].mxu0
        %v1877 = vadd.f32 0.0, %v1876
        %v1878 = vpop.f32.mrb[0].mxu0
        %1879 = vdwg.mxu0
        %v1880 = vld [vmem:[%s2] sm:$0x1]
        %v1881 = vadd.f32 %v1754, %v1757
        %v1882 = vadd.f32 %v1881, %v1762
        %v1883 = vadd.f32 %v1882, %v1765
        %v1884 = vadd.f32 %v1883, %v1770
        %v1885 = vadd.f32 %v1884, %v1773
        %v1886 = vadd.f32 %v1885, %v1778
        %v1887 = vadd.f32 %v1886, %v1781
        %v1888 = vadd.f32 %v1887, %v1786
        %v1889 = vadd.f32 %v1888, %v1789
        %v1890 = vadd.f32 %v1889, %v1794
        %v1891 = vadd.f32 %v1890, %v1797
        %v1892 = vadd.f32 %v1891, %v1802
        %v1893 = vadd.f32 %v1892, %v1805
        %v1894 = vadd.f32 %v1893, %v1810
        %v1895 = vadd.f32 %v1894, %v1813
        %v1896 = vadd.f32 %v1895, %v1818
        %v1897 = vadd.f32 %v1896, %v1821
        %v1898 = vadd.f32 %v1897, %v1826
        %v1899 = vadd.f32 %v1898, %v1829
        %v1900 = vadd.f32 %v1899, %v1834
        %v1901 = vadd.f32 %v1900, %v1837
        %v1902 = vadd.f32 %v1901, %v1842
        %v1903 = vadd.f32 %v1902, %v1845
        %v1904 = vadd.f32 %v1903, %v1850
        %v1905 = vadd.f32 %v1904, %v1853
        %v1906 = vadd.f32 %v1905, %v1858
        %v1907 = vadd.f32 %v1906, %v1861
        %v1908 = vadd.f32 %v1907, %v1866
        %v1909 = vadd.f32 %v1908, %v1869
        %v1910 = vadd.f32 %v1909, %v1874
        %v1911 = vadd.f32 %v1910, %v1877
        %v1912 = vrot.slane %v1911, 4
        %v1913 = vadd.f32 %v1911, %v1912
        %v1914 = vrot.slane %v1913, 2
        %v1915 = vadd.f32 %v1913, %v1914
        %v1916 = vrot.slane %v1915, 1
        %v1917 = vadd.f32 %v1915, %v1916
        %v1918 = vmul.f32 %v1754, %v1754
        %v1919 = vmul.f32 %v1757, %v1757
        %v1920 = vmul.f32 %v1762, %v1762
        %v1921 = vmul.f32 %v1765, %v1765
        %v1922 = vmul.f32 %v1770, %v1770
        %v1923 = vmul.f32 %v1773, %v1773
        %v1924 = vmul.f32 %v1778, %v1778
        %v1925 = vmul.f32 %v1781, %v1781
        %v1926 = vmul.f32 %v1786, %v1786
        %v1927 = vmul.f32 %v1789, %v1789
        %v1928 = vmul.f32 %v1794, %v1794
        %v1929 = vmul.f32 %v1797, %v1797
        %v1930 = vmul.f32 %v1802, %v1802
        %v1931 = vmul.f32 %v1805, %v1805
        %v1932 = vmul.f32 %v1810, %v1810
        %v1933 = vmul.f32 %v1813, %v1813
        %v1934 = vmul.f32 %v1818, %v1818
        %v1935 = vmul.f32 %v1821, %v1821
        %v1936 = vmul.f32 %v1826, %v1826
        %v1937 = vmul.f32 %v1829, %v1829
        %v1938 = vmul.f32 %v1834, %v1834
        %v1939 = vmul.f32 %v1837, %v1837
        %v1940 = vmul.f32 %v1842, %v1842
        %v1941 = vmul.f32 %v1845, %v1845
        %v1942 = vmul.f32 %v1850, %v1850
        %v1943 = vmul.f32 %v1853, %v1853
        %v1944 = vmul.f32 %v1858, %v1858
        %v1945 = vmul.f32 %v1861, %v1861
        %v1946 = vmul.f32 %v1866, %v1866
        %v1947 = vmul.f32 %v1869, %v1869
        %v1948 = vmul.f32 %v1874, %v1874
        %v1949 = vmul.f32 %v1877, %v1877
        %v1950 = vadd.f32 %v1918, %v1919
        %v1951 = vadd.f32 %v1950, %v1920
        %v1952 = vadd.f32 %v1951, %v1921
        %v1953 = vadd.f32 %v1952, %v1922
        %v1954 = vadd.f32 %v1953, %v1923
        %v1955 = vadd.f32 %v1954, %v1924
        %v1956 = vadd.f32 %v1955, %v1925
        %v1957 = vadd.f32 %v1956, %v1926
        %v1958 = vadd.f32 %v1957, %v1927
        %v1959 = vadd.f32 %v1958, %v1928
        %v1960 = vadd.f32 %v1959, %v1929
        %v1961 = vadd.f32 %v1960, %v1930
        %v1962 = vadd.f32 %v1961, %v1931
        %v1963 = vadd.f32 %v1962, %v1932
        %v1964 = vadd.f32 %v1963, %v1933
        %v1965 = vadd.f32 %v1964, %v1934
        %v1966 = vadd.f32 %v1965, %v1935
        %v1967 = vadd.f32 %v1966, %v1936
        %v1968 = vadd.f32 %v1967, %v1937
        %v1969 = vadd.f32 %v1968, %v1938
        %v1970 = vadd.f32 %v1969, %v1939
        %v1971 = vadd.f32 %v1970, %v1940
        %v1972 = vadd.f32 %v1971, %v1941
        %v1973 = vadd.f32 %v1972, %v1942
        %v1974 = vadd.f32 %v1973, %v1943
        %v1975 = vadd.f32 %v1974, %v1944
        %v1976 = vadd.f32 %v1975, %v1945
        %v1977 = vadd.f32 %v1976, %v1946
        %v1978 = vadd.f32 %v1977, %v1947
        %v1979 = vadd.f32 %v1978, %v1948
        %v1980 = vadd.f32 %v1979, %v1949
        %v1981 = vrot.slane %v1980, 4
        %v1982 = vadd.f32 %v1980, %v1981
        %v1983 = vrot.slane %v1982, 2
        %v1984 = vadd.f32 %v1982, %v1983
        %v1985 = vrot.slane %v1984, 1
        %v1986 = vadd.f32 %v1984, %v1985
        %v1987 = vmul.f32 %v1880, 256.0
        %v1988 = vadd.f32 %v1917, %v1987
        %v1989 = vmul.f32 %v1880, 2.0
        %v1990 = vmul.f32 %v1989, %v1917
        %v1991 = vadd.f32 %v1986, %v1990
        %v1992 = vmul.f32 %v1880, %v1880
        %v1993 = vmul.f32 %v1992, 256.0
        %v1994 = vadd.f32 %v1991, %v1993
        %v1995 = vld [vmem:[%s5] sm:$0xff]
        %v1996 = vld [vmem:[%s5 + $0x8] sm:$0xff]
        %v1997 = vld [vmem:[%s5 + $0x10] sm:$0xff]
        %v1998 = vld [vmem:[%s5 + $0x18] sm:$0xff]
        %v1999 = vld [vmem:[%s5 + $0x20] sm:$0xff]
        %v2000 = vld [vmem:[%s5 + $0x28] sm:$0xff]
        %v2001 = vld [vmem:[%s5 + $0x30] sm:$0xff]
        %v2002 = vld [vmem:[%s5 + $0x38] sm:$0xff]
        %v2003 = vld [vmem:[%s5 + $0x40] sm:$0xff]
        %v2004 = vld [vmem:[%s5 + $0x48] sm:$0xff]
        %v2005 = vld [vmem:[%s5 + $0x50] sm:$0xff]
        %v2006 = vld [vmem:[%s5 + $0x58] sm:$0xff]
        %v2007 = vld [vmem:[%s5 + $0x60] sm:$0xff]
        %v2008 = vld [vmem:[%s5 + $0x68] sm:$0xff]
        %v2009 = vld [vmem:[%s5 + $0x70] sm:$0xff]
        %v2010 = vld [vmem:[%s5 + $0x78] sm:$0xff]
        %2011 = vmatprep.subr.mxu0 0.0
        %2012 = vmatpush1.msra.mxu0 %v1995
        %2013 = vmatprep.subr.mxu0 0.0
        %2014 = vmatpush1.msra.mxu0 %v1996
        %2015 = vmatprep.subr.mxu0 0.0
        %2016 = vmatpush1.msra.mxu0 %v1997
        %2017 = vmatprep.subr.mxu0 0.0
        %2018 = vmatpush1.msra.mxu0 %v1998
        %2019 = vmatprep.subr.mxu0 0.0
        %2020 = vmatpush1.msra.mxu0 %v1999
        %2021 = vmatprep.subr.mxu0 0.0
        %2022 = vmatpush1.msra.mxu0 %v2000
        %2023 = vmatprep.subr.mxu0 0.0
        %2024 = vmatpush1.msra.mxu0 %v2001
        %2025 = vmatprep.subr.mxu0 0.0
        %2026 = vmatpush1.msra.mxu0 %v2002
        %2027 = vmatprep.subr.mxu0 0.0
        %2028 = vmatpush1.msra.mxu0 %v2003
        %2029 = vmatprep.subr.mxu0 0.0
        %2030 = vmatpush1.msra.mxu0 %v2004
        %2031 = vmatprep.subr.mxu0 0.0
        %2032 = vmatpush1.msra.mxu0 %v2005
        %2033 = vmatprep.subr.mxu0 0.0
        %2034 = vmatpush1.msra.mxu0 %v2006
        %2035 = vmatprep.subr.mxu0 0.0
        %2036 = vmatpush1.msra.mxu0 %v2007
        %2037 = vmatprep.subr.mxu0 0.0
        %2038 = vmatpush1.msra.mxu0 %v2008
        %2039 = vmatprep.subr.mxu0 0.0
        %2040 = vmatpush1.msra.mxu0 %v2009
        %2041 = vmatprep.subr.mxu0 0.0
        %2042 = vmatpush1.msra.mxu0 %v2010
        %2043 = vmatprep.subr.mxu0 0.0
        %2044 = vmatpush1.msra.mxu0 0.0
        %2045 = vmatprep.subr.mxu0 0.0
        %2046 = vmatpush1.msra.mxu0 0.0
        %2047 = vmatprep.subr.mxu0 0.0
        %2048 = vmatpush1.msra.mxu0 0.0
        %2049 = vmatprep.subr.mxu0 0.0
        %2050 = vmatpush1.msra.mxu0 0.0
        %2051 = vmatprep.subr.mxu0 0.0
        %2052 = vmatpush1.msra.mxu0 0.0
        %2053 = vmatprep.subr.mxu0 0.0
        %2054 = vmatpush1.msra.mxu0 0.0
        %2055 = vmatprep.subr.mxu0 0.0
        %2056 = vmatpush1.msra.mxu0 0.0
        %2057 = vmatprep.subr.mxu0 0.0
        %2058 = vmatpush1.msra.mxu0 0.0
        %2059 = vmatprep.subr.mxu0 0.0
        %2060 = vmatpush1.msra.mxu0 0.0
        %2061 = vmatprep.subr.mxu0 0.0
        %2062 = vmatpush1.msra.mxu0 0.0
        %2063 = vmatprep.subr.mxu0 0.0
        %2064 = vmatpush1.msra.mxu0 0.0
        %2065 = vmatprep.subr.mxu0 0.0
        %2066 = vmatpush1.msra.mxu0 0.0
        %2067 = vmatprep.subr.mxu0 0.0
        %2068 = vmatpush1.msra.mxu0 0.0
        %2069 = vmatprep.subr.mxu0 0.0
        %2070 = vmatpush1.msra.mxu0 0.0
        %2071 = vmatprep.subr.mxu0 0.0
        %2072 = vmatpush1.msra.mxu0 0.0
        %2073 = vmatprep.subr.mxu0 0.0
        %2074 = vmatpush1.msra.mxu0 0.0
        %2075 = vmatprep.mubr.f32.mxu0 0.0
        %2076 = vmatmul.mubr.f32.gmra.mrb[0].mxu0 %v1988
        %v2077 = vpop.f32.mrb[0].mxu0
        %v2078 = vadd.f32 0.0, %v2077
        %v2079 = vpop.f32.mrb[0].mxu0
        %2080 = vdwg.mxu0
        %v2081 = vmul.f32 %v2078, 0.00048828125
        %2082 = vmatprep.subr.mxu0 0.0
        %2083 = vmatpush1.msra.mxu0 %v1995
        %2084 = vmatprep.subr.mxu0 0.0
        %2085 = vmatpush1.msra.mxu0 %v1996
        %2086 = vmatprep.subr.mxu0 0.0
        %2087 = vmatpush1.msra.mxu0 %v1997
        %2088 = vmatprep.subr.mxu0 0.0
        %2089 = vmatpush1.msra.mxu0 %v1998
        %2090 = vmatprep.subr.mxu0 0.0
        %2091 = vmatpush1.msra.mxu0 %v1999
        %2092 = vmatprep.subr.mxu0 0.0
        %2093 = vmatpush1.msra.mxu0 %v2000
        %2094 = vmatprep.subr.mxu0 0.0
        %2095 = vmatpush1.msra.mxu0 %v2001
        %2096 = vmatprep.subr.mxu0 0.0
        %2097 = vmatpush1.msra.mxu0 %v2002
        %2098 = vmatprep.subr.mxu0 0.0
        %2099 = vmatpush1.msra.mxu0 %v2003
        %2100 = vmatprep.subr.mxu0 0.0
        %2101 = vmatpush1.msra.mxu0 %v2004
        %2102 = vmatprep.subr.mxu0 0.0
        %2103 = vmatpush1.msra.mxu0 %v2005
        %2104 = vmatprep.subr.mxu0 0.0
        %2105 = vmatpush1.msra.mxu0 %v2006
        %2106 = vmatprep.subr.mxu0 0.0
        %2107 = vmatpush1.msra.mxu0 %v2007
        %2108 = vmatprep.subr.mxu0 0.0
        %2109 = vmatpush1.msra.mxu0 %v2008
        %2110 = vmatprep.subr.mxu0 0.0
        %2111 = vmatpush1.msra.mxu0 %v2009
        %2112 = vmatprep.subr.mxu0 0.0
        %2113 = vmatpush1.msra.mxu0 %v2010
        %2114 = vmatprep.subr.mxu0 0.0
        %2115 = vmatpush1.msra.mxu0 0.0
        %2116 = vmatprep.subr.mxu0 0.0
        %2117 = vmatpush1.msra.mxu0 0.0
        %2118 = vmatprep.subr.mxu0 0.0
        %2119 = vmatpush1.msra.mxu0 0.0
        %2120 = vmatprep.subr.mxu0 0.0
        %2121 = vmatpush1.msra.mxu0 0.0
        %2122 = vmatprep.subr.mxu0 0.0
        %2123 = vmatpush1.msra.mxu0 0.0
        %2124 = vmatprep.subr.mxu0 0.0
        %2125 = vmatpush1.msra.mxu0 0.0
        %2126 = vmatprep.subr.mxu0 0.0
        %2127 = vmatpush1.msra.mxu0 0.0
        %2128 = vmatprep.subr.mxu0 0.0
        %2129 = vmatpush1.msra.mxu0 0.0
        %2130 = vmatprep.subr.mxu0 0.0
        %2131 = vmatpush1.msra.mxu0 0.0
        %2132 = vmatprep.subr.mxu0 0.0
        %2133 = vmatpush1.msra.mxu0 0.0
        %2134 = vmatprep.subr.mxu0 0.0
        %2135 = vmatpush1.msra.mxu0 0.0
        %2136 = vmatprep.subr.mxu0 0.0
        %2137 = vmatpush1.msra.mxu0 0.0
        %2138 = vmatprep.subr.mxu0 0.0
        %2139 = vmatpush1.msra.mxu0 0.0
        %2140 = vmatprep.subr.mxu0 0.0
        %2141 = vmatpush1.msra.mxu0 0.0
        %2142 = vmatprep.subr.mxu0 0.0
        %2143 = vmatpush1.msra.mxu0 0.0
        %2144 = vmatprep.subr.mxu0 0.0
        %2145 = vmatpush1.msra.mxu0 0.0
        %2146 = vmatprep.mubr.f32.mxu0 0.0
        %2147 = vmatmul.mubr.f32.gmra.mrb[0].mxu0 %v1994
        %v2148 = vpop.f32.mrb[0].mxu0
        %v2149 = vadd.f32 0.0, %v2148
        %v2150 = vpop.f32.mrb[0].mxu0
        %2151 = vdwg.mxu0
        %v2152 = vmul.f32 %v2149, 0.00048828125
        %v2153 = vmul.f32 %v2081, %v2081
        %v2154 = vsub.f32 %v2152, %v2153
        %v2155 = vadd.f32 %v2154, 1e-05
        %v2156 = vrsqrt.pop %v2155
        %v2157 = vld [vmem:[%s6] sm:$0xf]
        %vm2158 = vcmask 31744
        %v2160 = vsel %vm2158, %v2081, 0
        %vm2162 = vcmask 1043456
        %v2164 = vsel %vm2162, %v2157, 0
        %2166 = vmatprep.subr.mxu0 0.0
        %2167 = vmatpush1.msra.mxu0 %v2164
        %2168 = vmatprep.subr.mxu0 0.0
        %2169 = vmatpush1.msra.mxu0 0.0
        %2170 = vmatprep.subr.mxu0 0.0
        %2171 = vmatpush1.msra.mxu0 0.0
        %2172 = vmatprep.subr.mxu0 0.0
        %2173 = vmatpush1.msra.mxu0 0.0
        %2174 = vmatprep.subr.mxu0 0.0
        %2175 = vmatpush1.msra.mxu0 0.0
        %2176 = vmatprep.subr.mxu0 0.0
        %2177 = vmatpush1.msra.mxu0 0.0
        %2178 = vmatprep.subr.mxu0 0.0
        %2179 = vmatpush1.msra.mxu0 0.0
        %2180 = vmatprep.subr.mxu0 0.0
        %2181 = vmatpush1.msra.mxu0 0.0
        %2182 = vmatprep.subr.mxu0 0.0
        %2183 = vmatpush1.msra.mxu0 0.0
        %2184 = vmatprep.subr.mxu0 0.0
        %2185 = vmatpush1.msra.mxu0 0.0
        %2186 = vmatprep.subr.mxu0 0.0
        %2187 = vmatpush1.msra.mxu0 0.0
        %2188 = vmatprep.subr.mxu0 0.0
        %2189 = vmatpush1.msra.mxu0 0.0
        %2190 = vmatprep.subr.mxu0 0.0
        %2191 = vmatpush1.msra.mxu0 0.0
        %2192 = vmatprep.subr.mxu0 0.0
        %2193 = vmatpush1.msra.mxu0 0.0
        %2194 = vmatprep.subr.mxu0 0.0
        %2195 = vmatpush1.msra.mxu0 0.0
        %2196 = vmatprep.subr.mxu0 0.0
        %2197 = vmatpush1.msra.mxu0 0.0
        %2198 = vmatprep.subr.mxu0 0.0
        %2199 = vmatpush1.msra.mxu0 0.0
        %2200 = vmatprep.subr.mxu0 0.0
        %2201 = vmatpush1.msra.mxu0 0.0
        %2202 = vmatprep.subr.mxu0 0.0
        %2203 = vmatpush1.msra.mxu0 0.0
        %2204 = vmatprep.subr.mxu0 0.0
        %2205 = vmatpush1.msra.mxu0 0.0
        %2206 = vmatprep.subr.mxu0 0.0
        %2207 = vmatpush1.msra.mxu0 0.0
        %2208 = vmatprep.subr.mxu0 0.0
        %2209 = vmatpush1.msra.mxu0 0.0
        %2210 = vmatprep.subr.mxu0 0.0
        %2211 = vmatpush1.msra.mxu0 0.0
        %2212 = vmatprep.subr.mxu0 0.0
        %2213 = vmatpush1.msra.mxu0 0.0
        %2214 = vmatprep.subr.mxu0 0.0
        %2215 = vmatpush1.msra.mxu0 0.0
        %2216 = vmatprep.subr.mxu0 0.0
        %2217 = vmatpush1.msra.mxu0 0.0
        %2218 = vmatprep.subr.mxu0 0.0
        %2219 = vmatpush1.msra.mxu0 0.0
        %2220 = vmatprep.subr.mxu0 0.0
        %2221 = vmatpush1.msra.mxu0 0.0
        %2222 = vmatprep.subr.mxu0 0.0
        %2223 = vmatpush1.msra.mxu0 0.0
        %2224 = vmatprep.subr.mxu0 0.0
        %2225 = vmatpush1.msra.mxu0 0.0
        %2226 = vmatprep.subr.mxu0 0.0
        %2227 = vmatpush1.msra.mxu0 0.0
        %2228 = vmatprep.subr.mxu0 0.0
        %2229 = vmatpush1.msra.mxu0 0.0
        %2230 = vmatprep.mubr.f32.mxu0 0.0
        %2231 = vmatmul.mubr.f32.gmra.mrb[0].mxu0 %v2160
        %v2232 = vpop.f32.mrb[0].mxu0
        %v2233 = vadd.f32 0.0, %v2232
        %v2234 = vpop.f32.mrb[0].mxu0
        %2235 = vdwg.mxu0
        %v2237 = vsel %vm2158, %v2156, 0
        %2239 = vmatprep.subr.mxu0 0.0
        %2240 = vmatpush1.msra.mxu0 %v2164
        %2241 = vmatprep.subr.mxu0 0.0
        %2242 = vmatpush1.msra.mxu0 0.0
        %2243 = vmatprep.subr.mxu0 0.0
        %2244 = vmatpush1.msra.mxu0 0.0
        %2245 = vmatprep.subr.mxu0 0.0
        %2246 = vmatpush1.msra.mxu0 0.0
        %2247 = vmatprep.subr.mxu0 0.0
        %2248 = vmatpush1.msra.mxu0 0.0
        %2249 = vmatprep.subr.mxu0 0.0
        %2250 = vmatpush1.msra.mxu0 0.0
        %2251 = vmatprep.subr.mxu0 0.0
        %2252 = vmatpush1.msra.mxu0 0.0
        %2253 = vmatprep.subr.mxu0 0.0
        %2254 = vmatpush1.msra.mxu0 0.0
        %2255 = vmatprep.subr.mxu0 0.0
        %2256 = vmatpush1.msra.mxu0 0.0
        %2257 = vmatprep.subr.mxu0 0.0
        %2258 = vmatpush1.msra.mxu0 0.0
        %2259 = vmatprep.subr.mxu0 0.0
        %2260 = vmatpush1.msra.mxu0 0.0
        %2261 = vmatprep.subr.mxu0 0.0
        %2262 = vmatpush1.msra.mxu0 0.0
        %2263 = vmatprep.subr.mxu0 0.0
        %2264 = vmatpush1.msra.mxu0 0.0
        %2265 = vmatprep.subr.mxu0 0.0
        %2266 = vmatpush1.msra.mxu0 0.0
        %2267 = vmatprep.subr.mxu0 0.0
        %2268 = vmatpush1.msra.mxu0 0.0
        %2269 = vmatprep.subr.mxu0 0.0
        %2270 = vmatpush1.msra.mxu0 0.0
        %2271 = vmatprep.subr.mxu0 0.0
        %2272 = vmatpush1.msra.mxu0 0.0
        %2273 = vmatprep.subr.mxu0 0.0
        %2274 = vmatpush1.msra.mxu0 0.0
        %2275 = vmatprep.subr.mxu0 0.0
        %2276 = vmatpush1.msra.mxu0 0.0
        %2277 = vmatprep.subr.mxu0 0.0
        %2278 = vmatpush1.msra.mxu0 0.0
        %2279 = vmatprep.subr.mxu0 0.0
        %2280 = vmatpush1.msra.mxu0 0.0
        %2281 = vmatprep.subr.mxu0 0.0
        %2282 = vmatpush1.msra.mxu0 0.0
        %2283 = vmatprep.subr.mxu0 0.0
        %2284 = vmatpush1.msra.mxu0 0.0
        %2285 = vmatprep.subr.mxu0 0.0
        %2286 = vmatpush1.msra.mxu0 0.0
        %2287 = vmatprep.subr.mxu0 0.0
        %2288 = vmatpush1.msra.mxu0 0.0
        %2289 = vmatprep.subr.mxu0 0.0
        %2290 = vmatpush1.msra.mxu0 0.0
        %2291 = vmatprep.subr.mxu0 0.0
        %2292 = vmatpush1.msra.mxu0 0.0
        %2293 = vmatprep.subr.mxu0 0.0
        %2294 = vmatpush1.msra.mxu0 0.0
        %2295 = vmatprep.subr.mxu0 0.0
        %2296 = vmatpush1.msra.mxu0 0.0
        %2297 = vmatprep.subr.mxu0 0.0
        %2298 = vmatpush1.msra.mxu0 0.0
        %2299 = vmatprep.subr.mxu0 0.0
        %2300 = vmatpush1.msra.mxu0 0.0
        %2301 = vmatprep.subr.mxu0 0.0
        %2302 = vmatpush1.msra.mxu0 0.0
        %2303 = vmatprep.mubr.f32.mxu0 0.0
        %2304 = vmatmul.mubr.f32.gmra.mrb[0].mxu0 %v2237
        %v2305 = vpop.f32.mrb[0].mxu0
        %v2306 = vadd.f32 0.0, %v2305
        %v2307 = vpop.f32.mrb[0].mxu0
        %2308 = vdwg.mxu0
        %v2309 = vld [vmem:[%s3] sm:$0x1]
        %v2310 = vmul.f32 %v2306, %v2309
        %v2311 = vld [vmem:[%s4] sm:$0x1]
        %v2312 = vsub.f32 %v1880, %v2233
        %v2313 = vmul.f32 %v2312, %v2310
        %v2314 = vadd.f32 %v2311, %v2313
        %v2315 = vlaneseq
        %v2316 = vshrl.u32 %v2315, 7
        %v2317 = vsub.s32 0, %v2316
        %v2318 = vrot.slane %v2310, %v2317
        %v2319 = vmul.f32 %v1754, %v2318
        %v2320 = vmul.f32 %v1757, %v2318
        %v2321 = vmul.f32 %v1762, %v2318
        %v2322 = vmul.f32 %v1765, %v2318
        %v2323 = vmul.f32 %v1770, %v2318
        %v2324 = vmul.f32 %v1773, %v2318
        %v2325 = vmul.f32 %v1778, %v2318
        %v2326 = vmul.f32 %v1781, %v2318
        %v2327 = vmul.f32 %v1786, %v2318
        %v2328 = vmul.f32 %v1789, %v2318
        %v2329 = vmul.f32 %v1794, %v2318
        %v2330 = vmul.f32 %v1797, %v2318
        %v2331 = vmul.f32 %v1802, %v2318
        %v2332 = vmul.f32 %v1805, %v2318
        %v2333 = vmul.f32 %v1810, %v2318
        %v2334 = vmul.f32 %v1813, %v2318
        %v2335 = vmul.f32 %v1818, %v2318
        %v2336 = vmul.f32 %v1821, %v2318
        %v2337 = vmul.f32 %v1826, %v2318
        %v2338 = vmul.f32 %v1829, %v2318
        %v2339 = vmul.f32 %v1834, %v2318
        %v2340 = vmul.f32 %v1837, %v2318
        %v2341 = vmul.f32 %v1842, %v2318
        %v2342 = vmul.f32 %v1845, %v2318
        %v2343 = vmul.f32 %v1850, %v2318
        %v2344 = vmul.f32 %v1853, %v2318
        %v2345 = vmul.f32 %v1858, %v2318
        %v2346 = vmul.f32 %v1861, %v2318
        %v2347 = vmul.f32 %v1866, %v2318
        %v2348 = vmul.f32 %v1869, %v2318
        %v2349 = vmul.f32 %v1874, %v2318
        %v2350 = vmul.f32 %v1877, %v2318
        %v2352 = vlaneseq
        %v2353 = vshrl.u32 %v2352, 7
        %v2354 = vsub.s32 0, %v2353
        %v2355 = vrot.slane %v2314, %v2354
        %v2357 = vadd.f32 %v2319, %v2355
        %v2358 = vadd.f32 %v2320, %v2355
        %v2359 = vadd.f32 %v2321, %v2355
        %v2360 = vadd.f32 %v2322, %v2355
        %v2361 = vadd.f32 %v2323, %v2355
        %v2362 = vadd.f32 %v2324, %v2355
        %v2363 = vadd.f32 %v2325, %v2355
        %v2364 = vadd.f32 %v2326, %v2355
        %v2365 = vadd.f32 %v2327, %v2355
        %v2366 = vadd.f32 %v2328, %v2355
        %v2367 = vadd.f32 %v2329, %v2355
        %v2368 = vadd.f32 %v2330, %v2355
        %v2369 = vadd.f32 %v2331, %v2355
        %v2370 = vadd.f32 %v2332, %v2355
        %v2371 = vadd.f32 %v2333, %v2355
        %v2372 = vadd.f32 %v2334, %v2355
        %v2373 = vadd.f32 %v2335, %v2355
        %v2374 = vadd.f32 %v2336, %v2355
        %v2375 = vadd.f32 %v2337, %v2355
        %v2376 = vadd.f32 %v2338, %v2355
        %v2377 = vadd.f32 %v2339, %v2355
        %v2378 = vadd.f32 %v2340, %v2355
        %v2379 = vadd.f32 %v2341, %v2355
        %v2380 = vadd.f32 %v2342, %v2355
        %v2381 = vadd.f32 %v2343, %v2355
        %v2382 = vadd.f32 %v2344, %v2355
        %v2383 = vadd.f32 %v2345, %v2355
        %v2384 = vadd.f32 %v2346, %v2355
        %v2385 = vadd.f32 %v2347, %v2355
        %v2386 = vadd.f32 %v2348, %v2355
        %v2387 = vadd.f32 %v2349, %v2355
        %v2388 = vadd.f32 %v2350, %v2355
        %v2389 = vmax.f32 %v2357, 0.0
        %v2390 = vmax.f32 %v2358, 0.0
        %v2391 = vmax.f32 %v2359, 0.0
        %v2392 = vmax.f32 %v2360, 0.0
        %v2393 = vmax.f32 %v2361, 0.0
        %v2394 = vmax.f32 %v2362, 0.0
        %v2395 = vmax.f32 %v2363, 0.0
        %v2396 = vmax.f32 %v2364, 0.0
        %v2397 = vmax.f32 %v2365, 0.0
        %v2398 = vmax.f32 %v2366, 0.0
        %v2399 = vmax.f32 %v2367, 0.0
        %v2400 = vmax.f32 %v2368, 0.0
        %v2401 = vmax.f32 %v2369, 0.0
        %v2402 = vmax.f32 %v2370, 0.0
        %v2403 = vmax.f32 %v2371, 0.0
        %v2404 = vmax.f32 %v2372, 0.0
        %v2405 = vmax.f32 %v2373, 0.0
        %v2406 = vmax.f32 %v2374, 0.0
        %v2407 = vmax.f32 %v2375, 0.0
        %v2408 = vmax.f32 %v2376, 0.0
        %v2409 = vmax.f32 %v2377, 0.0
        %v2410 = vmax.f32 %v2378, 0.0
        %v2411 = vmax.f32 %v2379, 0.0
        %v2412 = vmax.f32 %v2380, 0.0
        %v2413 = vmax.f32 %v2381, 0.0
        %v2414 = vmax.f32 %v2382, 0.0
        %v2415 = vmax.f32 %v2383, 0.0
        %v2416 = vmax.f32 %v2384, 0.0
        %v2417 = vmax.f32 %v2385, 0.0
        %v2418 = vmax.f32 %v2386, 0.0
        %v2419 = vmax.f32 %v2387, 0.0
        %v2420 = vmax.f32 %v2388, 0.0
        %v2421 = vpack.c.bf16 %v2390, %v2389
        %v2422 = vpack.c.bf16 %v2392, %v2391
        %v2423 = vpack.c.bf16 %v2394, %v2393
        %v2424 = vpack.c.bf16 %v2396, %v2395
        %v2425 = vpack.c.bf16 %v2398, %v2397
        %v2426 = vpack.c.bf16 %v2400, %v2399
        %v2427 = vpack.c.bf16 %v2402, %v2401
        %v2428 = vpack.c.bf16 %v2404, %v2403
        %v2429 = vpack.c.bf16 %v2406, %v2405
        %v2430 = vpack.c.bf16 %v2408, %v2407
        %v2431 = vpack.c.bf16 %v2410, %v2409
        %v2432 = vpack.c.bf16 %v2412, %v2411
        %v2433 = vpack.c.bf16 %v2414, %v2413
        %v2434 = vpack.c.bf16 %v2416, %v2415
        %v2435 = vpack.c.bf16 %v2418, %v2417
        %v2436 = vpack.c.bf16 %v2420, %v2419
        %v2453 = vunpack.c.l.b16 %v2421
        %v2454 = vunpack.c.h.b16 %v2421
        %v2455 = vunpack.c.l.b16 %v2422
        %v2456 = vunpack.c.h.b16 %v2422
        %v2457 = vunpack.c.l.b16 %v2423
        %v2458 = vunpack.c.h.b16 %v2423
        %v2459 = vunpack.c.l.b16 %v2424
        %v2460 = vunpack.c.h.b16 %v2424
        %v2461 = vunpack.c.l.b16 %v2425
        %v2462 = vunpack.c.h.b16 %v2425
        %v2463 = vunpack.c.l.b16 %v2426
        %v2464 = vunpack.c.h.b16 %v2426
        %v2465 = vunpack.c.l.b16 %v2427
        %v2466 = vunpack.c.h.b16 %v2427
        %v2467 = vunpack.c.l.b16 %v2428
        %v2468 = vunpack.c.h.b16 %v2428
        %v2469 = vunpack.c.l.b16 %v2429
        %v2470 = vunpack.c.h.b16 %v2429
        %v2471 = vunpack.c.l.b16 %v2430
        %v2472 = vunpack.c.h.b16 %v2430
        %v2473 = vunpack.c.l.b16 %v2431
        %v2474 = vunpack.c.h.b16 %v2431
        %v2475 = vunpack.c.l.b16 %v2432
        %v2476 = vunpack.c.h.b16 %v2432
        %v2477 = vunpack.c.l.b16 %v2433
        %v2478 = vunpack.c.h.b16 %v2433
        %v2479 = vunpack.c.l.b16 %v2434
        %v2480 = vunpack.c.h.b16 %v2434
        %v2481 = vunpack.c.l.b16 %v2435
        %v2482 = vunpack.c.h.b16 %v2435
        %v2483 = vunpack.c.l.b16 %v2436
        %v2484 = vunpack.c.h.b16 %v2436
        %v2485 = vpack.c.b16 %v2453, %v2453
        %v2486 = vpack.c.b16 %v2454, %v2454
        %v2487 = vpack.c.b16 %v2455, %v2455
        %v2488 = vpack.c.b16 %v2456, %v2456
        %v2489 = vpack.c.b16 %v2457, %v2457
        %v2490 = vpack.c.b16 %v2458, %v2458
        %v2491 = vpack.c.b16 %v2459, %v2459
        %v2492 = vpack.c.b16 %v2460, %v2460
        %v2493 = vpack.c.b16 %v2461, %v2461
        %v2494 = vpack.c.b16 %v2462, %v2462
        %v2495 = vpack.c.b16 %v2463, %v2463
        %v2496 = vpack.c.b16 %v2464, %v2464
        %v2497 = vpack.c.b16 %v2465, %v2465
        %v2498 = vpack.c.b16 %v2466, %v2466
        %v2499 = vpack.c.b16 %v2467, %v2467
        %v2500 = vpack.c.b16 %v2468, %v2468
        %v2501 = vpack.c.b16 %v2469, %v2469
        %v2502 = vpack.c.b16 %v2470, %v2470
        %v2503 = vpack.c.b16 %v2471, %v2471
        %v2504 = vpack.c.b16 %v2472, %v2472
        %v2505 = vpack.c.b16 %v2473, %v2473
        %v2506 = vpack.c.b16 %v2474, %v2474
        %v2507 = vpack.c.b16 %v2475, %v2475
        %v2508 = vpack.c.b16 %v2476, %v2476
        %v2509 = vpack.c.b16 %v2477, %v2477
        %v2510 = vpack.c.b16 %v2478, %v2478
        %v2511 = vpack.c.b16 %v2479, %v2479
        %v2512 = vpack.c.b16 %v2480, %v2480
        %v2513 = vpack.c.b16 %v2481, %v2481
        %v2514 = vpack.c.b16 %v2482, %v2482
        %v2515 = vpack.c.b16 %v2483, %v2483
        %v2516 = vpack.c.b16 %v2484, %v2484
        %2549 = vst [vmem:[%s271] sm:$0xf] %v2485
        %2550 = vst [vmem:[%s271 + $0x4] sm:$0xf] %v2486
        %2551 = vst [vmem:[%s271 + $0x8] sm:$0xf] %v2487
        %2552 = vst [vmem:[%s271 + $0xc] sm:$0xf] %v2488
        %2553 = vst [vmem:[%s271 + $0x10] sm:$0xf] %v2489
        %2554 = vst [vmem:[%s271 + $0x14] sm:$0xf] %v2490
        %2555 = vst [vmem:[%s271 + $0x18] sm:$0xf] %v2491
        %2556 = vst [vmem:[%s271 + $0x1c] sm:$0xf] %v2492
        %2557 = vst [vmem:[%s271 + $0x20] sm:$0xf] %v2493
        %2558 = vst [vmem:[%s271 + $0x24] sm:$0xf] %v2494
        %2559 = vst [vmem:[%s271 + $0x28] sm:$0xf] %v2495
        %2560 = vst [vmem:[%s271 + $0x2c] sm:$0xf] %v2496
        %2561 = vst [vmem:[%s271 + $0x30] sm:$0xf] %v2497
        %2562 = vst [vmem:[%s271 + $0x34] sm:$0xf] %v2498
        %2563 = vst [vmem:[%s271 + $0x38] sm:$0xf] %v2499
        %2564 = vst [vmem:[%s271 + $0x3c] sm:$0xf] %v2500
        %2565 = vst [vmem:[%s271 + $0x40] sm:$0xf] %v2501
        %2566 = vst [vmem:[%s271 + $0x44] sm:$0xf] %v2502
        %2567 = vst [vmem:[%s271 + $0x48] sm:$0xf] %v2503
        %2568 = vst [vmem:[%s271 + $0x4c] sm:$0xf] %v2504
        %2569 = vst [vmem:[%s271 + $0x50] sm:$0xf] %v2505
        %2570 = vst [vmem:[%s271 + $0x54] sm:$0xf] %v2506
        %2571 = vst [vmem:[%s271 + $0x58] sm:$0xf] %v2507
        %2572 = vst [vmem:[%s271 + $0x5c] sm:$0xf] %v2508
        %2573 = vst [vmem:[%s271 + $0x60] sm:$0xf] %v2509
        %2574 = vst [vmem:[%s271 + $0x64] sm:$0xf] %v2510
        %2575 = vst [vmem:[%s271 + $0x68] sm:$0xf] %v2511
        %2576 = vst [vmem:[%s271 + $0x6c] sm:$0xf] %v2512
        %2577 = vst [vmem:[%s271 + $0x70] sm:$0xf] %v2513
        %2578 = vst [vmem:[%s271 + $0x74] sm:$0xf] %v2514
        %2579 = vst [vmem:[%s271 + $0x78] sm:$0xf] %v2515
        %2580 = vst [vmem:[%s271 + $0x7c] sm:$0xf] %v2516
        %s2581 = sand.u32 %s181, 1
        %s2582 = scalar_lea.sflag [#allocation3], %s2581
        %s2583 = sand.u32 %s181, 1
        %s2584 = smul.addr %s2583, 128
        %s2585 = scalar_lea.vmem [#allocation2], %s2584
        // Predicated region
        $region49: #{unet_conv_layer.1} parent=47 // pred_check
          %p2586 = pneg %p191
        $region50: #{unet_conv_layer.1} parent=47 // pred_check_branch
          %2588 = sbr.rel (%p2586) target = $region52
        $region51: #{unet_conv_layer.1} parent=47 // pred_region
          %s2590 = ssub.s32 2048, 2048
          %2591 = vsyncadd %s2582, %s2590
          %s2592 = smul.addr %s21, 32
          %s2593 = smul.addr %s2592, 64
          %s2594 = scalar_lea.hbm %s7, %s2593
          %s2595 = sshll.u32 %s2585, 4
          %s2596 = int_to_ptr.vmem [resolvable:$true] %s2595
          %2601 = dma.vmem_to_hbm [thread:$0]  %s2596, 2048, %s2594, %s2582, 64, 64, 4
        $region52: #{unet_conv_layer.1} parent=47 // pred_fallthru
          _
      $region48: #{unet_conv_layer.1} parent=5 // pred_fallthru
        _
      %p2602 = scmp.le.s32.totalorder 2, %s16
      // Predicated region
      $region53: #{unet_conv_layer.1} parent=5 // pred_check
        %p2603 = pneg %p2602
      $region54: #{unet_conv_layer.1} parent=5 // pred_check_branch
        %2605 = sbr.rel (%p2603) target = $region56
      $region55: #{unet_conv_layer.1} parent=5 // pred_region
        %s2606 = ssub.s32 %s16, 2
        // Predicated region
        $region57: #{unet_conv_layer.1} parent=55 // pred_check
          %p2607 = pneg %p197
        $region58: #{unet_conv_layer.1} parent=55 // pred_check_branch
          %2609 = sbr.rel (%p2607) target = $region60
        $region59: #{unet_conv_layer.1} parent=55 // pred_region
          %s2610 = sand.u32 %s182, 1
          %s2611 = scalar_lea.sflag [#allocation3], %s2610
          %s2612 = sand.u32 %s182, 1
          %s2613 = smul.addr %s2612, 128
          %s2614 = scalar_lea.vmem [#allocation2], %s2613
          %2615 = dma.done %s2611, 2048
        $region60: #{unet_conv_layer.1} parent=55 // pred_fallthru
          _
      $region56: #{unet_conv_layer.1} parent=5 // pred_fallthru
        _
    $region6: #{unet_conv_layer.1} parent=1 // loop_footer
      %s20 = sadd.s32 1, %s16
    $region7: #{unet_conv_layer.1} parent=1 // loop_footer_branch
      %15 = sbr.rel target = $region3
    $region8: #{unet_conv_layer.1} parent=1 // loop_exit
      _
    %2616 = vsyncpa [#allocation3], 1
    %s2617 = scalar_lea.sflag [#allocation3], 1
    %2618 = vsyncpa %s2617, 1

</llo_original>
